<compile_context>
chip_gen: v5e
topology: v5e:2x2
jax: 0.10.0
libtpu: 0.0.40
codegen_flags: <defaults>
</compile_context>

<pallas_src>
import functools
import math

import jax
import jax.numpy as jnp
from jax import lax
from jax.experimental import pallas as pl
from jax.experimental.pallas import tpu as pltpu

F32 = jnp.float32
BF16 = jnp.bfloat16
BN_EPS = 1e-5


# ----------------------------------------------------------------------------
# helpers
# ----------------------------------------------------------------------------
def _nbytes(a):
    return int(math.prod(a.shape)) * jnp.dtype(a.dtype).itemsize


def _vmem_limit_bytes(args, outs):
    """Scoped-VMEM limit sized from resident buffers, generous headroom,
    clamped to v7x physical VMEM (64 MiB)."""
    need = sum(_nbytes(a) for a in list(args) + list(outs))
    return int(min(max(4 * need + (8 << 20), 32 << 20), 64 << 20))


def _pick_chunk(n):
    """Largest row-chunk (multiple of 8 where possible) that divides n."""
    for c in (512, 256, 128, 64, 32, 16, 8):
        if n % c == 0:
            return c
    return n


# ----------------------------------------------------------------------------
# Kernel A: kappa, fn-MLPs, WeightMLP, gamma / gamma2, curvature loss.
# ----------------------------------------------------------------------------
def _curvature_kernel(x_col_ref, x_row_ref, ea_col_ref, gt_ref,
                      ccol_ref, crow_ref, cb2_ref,
                      fw1_ref, fb1_ref, fw2_ref, fb2_ref,
                      ww1_ref, wb1_ref, ww2_ref, wb2_ref, ww3_ref, wb3_ref,
                      kappa_ref, loss_ref,
                      kcol_scr,
                      *, n_edges, chunk, n_chunks):
    E = n_edges
    x_col = x_col_ref[...]                      # (N, 1)
    x_row = x_row_ref[...]                      # (1, N)
    cb2 = cb2_ref[...]                          # (1, 1)

    # --- CurvatureMLP on the VPU (degenerate K=1 / N=1 matmuls off the MXU) ---
    # column form (for the loss, kept in VMEM scratch for dynamic row slicing)
    cw1_r = crow_ref[0:1, :]                    # (1, 20)
    cb1_r = crow_ref[1:2, :]
    cw2_r = crow_ref[2:3, :]
    hc_col = jnp.maximum(x_col * cw1_r + cb1_r, 0.0)                        # (N, 20)
    kappa_col = jax.nn.sigmoid(
        jnp.sum(hc_col * cw2_r, axis=1, keepdims=True) + cb2)               # (N, 1)
    kcol_scr[...] = kappa_col

    # row form (lane-dense (1, N) output)
    cw1_c = ccol_ref[:, 0:1]                    # (20, 1)
    cb1_c = ccol_ref[:, 1:2]
    cw2_c = ccol_ref[:, 2:3]
    hc_row = jnp.maximum(cw1_c * x_row + cb1_c, 0.0)                        # (20, N)
    kappa_ref[...] = jax.nn.sigmoid(
        jnp.sum(cw2_c * hc_row, axis=0, keepdims=True) + cb2)               # (1, N)

    # --- three fn CurvatureMLPs, stacked row-form -----------------------------
    # fw1/fb1 are the 3 fc1 weights stacked (60,1); fw2 is the (3,60) block
    # matrix holding each fn's fc2 weights in its own 20-column block.
    hf = jnp.maximum(fw1_ref[...] * x_row + fb1_ref[...], 0.0)              # (60, N)
    f = jax.nn.sigmoid(
        jnp.dot(fw2_ref[...], hf, preferred_element_type=F32) + fb2_ref[...])  # (3, N)

    # --- WeightMLP over edge_attr (layer 1 on the VPU: M=1 matmul) ------------
    h1 = jnp.maximum(
        jnp.sum(ea_col_ref[...] * ww1_ref[...], axis=0, keepdims=True)
        + wb1_ref[...], 0.0)                                                # (1, 64)
    h2 = jnp.maximum(
        jnp.dot(h1, ww2_ref[...], preferred_element_type=F32) + wb2_ref[...], 0.0)
    we = jax.nn.sigmoid(
        jnp.dot(h2, ww3_ref[...], preferred_element_type=F32) + wb3_ref[...])  # (1, E)

    # --- Bakry-Emery gamma / gamma2 via one-hot matmuls ------------------------
    # bf16 MXU operands, f32 accumulation (one-hot side exact; f/gamma side bf16).
    gt = gt_ref[...]                            # (N, 2E) bf16: [src one-hot | dst one-hot]
    src_t = gt[:, :E]                           # (N, E)

    def gather(rows):                           # (R, N) -> (R, 2E): rows[:, src] | rows[:, dst]
        return jnp.dot(rows.astype(BF16), gt, preferred_element_type=F32)

    def scatter_to_src(ev):                     # (R, E) -> (R, N): scatter_add over src
        return lax.dot_general(ev.astype(BF16), src_t,
                               dimension_numbers=(((1,), (1,)), ((), ())),
                               preferred_element_type=F32)

    f_both = gather(f)                                                      # (3, 2E)
    f_src, f_dst = f_both[:, :E], f_both[:, E:]
    d = f_dst - f_src
    wd = we * d
    delta_f = scatter_to_src(wd)                                            # (3, N)
    gamma_f = 0.5 * scatter_to_src(wd * d)                                  # (3, N)

    g_both = gather(gamma_f)                                                # (3, 2E)
    df_both = gather(delta_f)                                               # (3, 2E)
    delta_gamma = scatter_to_src(we * (g_both[:, E:] - g_both[:, :E]))      # (3, N)
    gamma_f_delta = 0.5 * scatter_to_src(wd * (df_both[:, E:] - df_both[:, :E]))
    gamma2 = 0.5 * delta_gamma - gamma_f_delta                              # (3, N)

    # --- curvature loss, row-chunked over kappa --------------------------------
    # torch: kappa (N,1) * gamma (N,) broadcasts to (N,N); we sum relu(.) over the
    # full outer product without ever materializing an (N,N) temporary.
    def chunk_body(c, acc):
        start = pl.multiple_of(c * chunk, chunk)
        kap = kcol_scr[pl.ds(start, chunk), :]                              # (chunk, 1)
        for k in range(3):
            diff = kap * gamma_f[k:k + 1, :] - gamma2[k:k + 1, :]           # (chunk, N)
            acc = acc + jnp.sum(
                jnp.sum(jnp.maximum(diff, 0.0), axis=1, keepdims=True),
                axis=0, keepdims=True)
        return acc

    relu_sum = lax.fori_loop(0, n_chunks, chunk_body, jnp.zeros((1, 1), F32))
    kap_sum = jnp.sum(kappa_col, axis=0, keepdims=True)                     # (1, 1)
    loss_ref[...] = relu_sum - 3.0 * kap_sum


# ----------------------------------------------------------------------------
# Kernel B: embedding + GIN stack + BN/ReLU/residual + mean pool + head.
# ----------------------------------------------------------------------------
def _gnn_kernel(h_in_ref, emb_w_ref, emb_b_ref, adj_ref, keep_ref,
                gw1_ref, gb1_ref, gw2_ref, gb2_ref, bng_ref, bnb_ref,
                pool_ref, pw_ref, pb_ref, f2w_ref, f2b_ref,
                out_ref, *, nlayers):
    def mm(a, b):  # bf16 MXU operands (cast only at the dot), f32 accumulate
        return jnp.dot(a.astype(BF16), b.astype(BF16), preferred_element_type=F32)

    adj = adj_ref[...]                                           # (N, N) bf16, loaded once
    h = mm(h_in_ref[...], emb_w_ref[...]) + emb_b_ref[...]       # (N, nhid)

    def layer_body(layer, h):
        keep = keep_ref[layer]                                   # (N, 1) f32
        # masked adjacency: diag(keep) A diag(keep) h  ==  keep * (A @ (keep * h))
        msg = keep * jnp.dot(adj, (keep * h).astype(BF16), preferred_element_type=F32)
        agg = h + msg                                            # GIN, eps = 0
        t = jnp.maximum(mm(agg, gw1_ref[layer]) + gb1_ref[layer], 0.0)
        y = mm(t, gw2_ref[layer]) + gb2_ref[layer]
        # training-mode BatchNorm1d (batch statistics, biased variance)
        mean = jnp.mean(y, axis=0, keepdims=True)
        var = jnp.mean((y - mean) ** 2, axis=0, keepdims=True)
        yn = (y - mean) * lax.rsqrt(var + BN_EPS)
        # ReLU + residual (dropout p = 0.0 -> identity)
        return jnp.maximum(yn * bng_ref[layer] + bnb_ref[layer], 0.0) + h

    h = lax.fori_loop(0, nlayers, layer_body, h, unroll=(nlayers <= 4))

    pooled = mm(pool_ref[...], h)                                # (G, nhid) mean pool
    ph = jnp.maximum(mm(pooled, pw_ref[...]) + pb_ref[...], 0.0) # pred + ReLU
    out_ref[...] = mm(ph, f2w_ref[...]) + f2b_ref[...]           # fc2


# ----------------------------------------------------------------------------
# Deterministic parameter init (weights stored as (in, out)), pre-packed for
# the fused kernels.
# ----------------------------------------------------------------------------
def init_params(key, nfeat, nhid, nlayers, nclass, multiplier, n_edges):
    keys = iter(jax.random.split(key, 64))

    def lin(din, dout, scale=0.1):
        kw, kb = jax.random.split(next(keys))
        return (scale * jax.random.normal(kw, (din, dout), F32),
                scale * jax.random.normal(kb, (1, dout), F32))

    p = {}
    p["emb_w"], p["emb_b"] = lin(nfeat, nhid)

    # CurvatureMLP(1, 20) packed in both orientations (VPU evaluation)
    cw1, cb1 = lin(1, 20)          # (1,20), (1,20)
    cw2, cb2 = lin(20, 1)          # (20,1), (1,1)
    p["ccol"] = jnp.concatenate([cw1.T, cb1.T, cw2], axis=1)     # (20, 3)
    p["crow"] = jnp.concatenate([cw1, cb1, cw2.T], axis=0)       # (3, 20)
    p["cb2"] = cb2                                               # (1, 1)

    # 3 fn CurvatureMLPs packed for stacked row-oriented evaluation
    fw1, fb1, fw2_rows, fb2 = [], [], [], []
    for i in range(3):
        w1, b1 = lin(1, 20)
        w2, b2 = lin(20, 1)
        fw1.append(w1.T)                                         # (20, 1)
        fb1.append(b1.T)                                         # (20, 1)
        fw2_rows.append(jnp.zeros((1, 60), F32).at[:, i * 20:(i + 1) * 20].set(w2.T))
        fb2.append(b2)                                           # (1, 1)
    p["fw1"] = jnp.concatenate(fw1, axis=0)                      # (60, 1)
    p["fb1"] = jnp.concatenate(fb1, axis=0)                      # (60, 1)
    p["fw2"] = jnp.concatenate(fw2_rows, axis=0)                 # (3, 60)
    p["fb2"] = jnp.concatenate(fb2, axis=0)                      # (3, 1)

    # TODO(synk): WeightMLP is lazily built on input_dim == E in PyTorch; E is
    # static here so the layers are built once at init.
    p["ww1"], p["wb1"] = lin(n_edges, 64)
    p["ww2"], p["wb2"] = lin(64, 64)
    p["ww3"], p["wb3"] = lin(64, n_edges)

    # GIN stack (eps=0, Linear-ReLU-Linear MLP) + BatchNorm params, stacked per layer
    g = [(lin(nhid, nhid), lin(nhid, nhid)) for _ in range(nlayers)]
    p["gw1"] = jnp.stack([gg[0][0] for gg in g])                 # (L, nhid, nhid)
    p["gb1"] = jnp.stack([gg[0][1] for gg in g])                 # (L, 1, nhid)
    p["gw2"] = jnp.stack([gg[1][0] for gg in g])
    p["gb2"] = jnp.stack([gg[1][1] for gg in g])
    p["bng"] = jnp.ones((nlayers, 1, nhid), F32)
    p["bnb"] = jnp.zeros((nlayers, 1, nhid), F32)

    # prediction head (nclass == 1, jk == False)
    p["pw"], p["pb"] = lin(nhid, multiplier * nhid)
    p["f2w"], p["f2b"] = lin(multiplier * nhid, nclass)
    return p


# ----------------------------------------------------------------------------
# Forward pass (nclass=1, jk=False, readout='mean', dropout=0.0, training BN).
# ----------------------------------------------------------------------------
@functools.partial(jax.jit, static_argnames=("n_graphs", "nlayers", "p"))
def gnn_bench_forward(params, h_in, x, edge_index, edge_attr, batch_idx,
                      n_graphs, nlayers, p=10):
    n_nodes = h_in.shape[0]
    n_edges = edge_index.shape[1]
    nclass = params["f2w"].shape[1]
    src, dst = edge_index[0], edge_index[1]

    # ---- data-independent XLA glue ------------------------------------------
    node_ids = jnp.arange(n_nodes, dtype=jnp.int32)
    src_oh_t = (node_ids[:, None] == src[None, :]).astype(BF16)   # (N, E)
    dst_oh_t = (node_ids[:, None] == dst[None, :]).astype(BF16)   # (N, E)
    gt = jnp.concatenate([src_oh_t, dst_oh_t], axis=1)            # (N, 2E) bf16

    x_col = x.reshape(n_nodes, 1).astype(F32)
    x_row = x.reshape(1, n_nodes).astype(F32)
    ea_col = edge_attr.reshape(n_edges, 1).astype(F32)

    chunk = _pick_chunk(n_nodes)
    n_chunks = n_nodes // chunk

    # ---- Kernel A: kappa + curvature loss -----------------------------------
    a_args = (x_col, x_row, ea_col, gt,
              params["ccol"], params["crow"], params["cb2"],
              params["fw1"], params["fb1"], params["fw2"], params["fb2"],
              params["ww1"], params["wb1"], params["ww2"], params["wb2"],
              params["ww3"], params["wb3"])
    a_out = [jax.ShapeDtypeStruct((1, n_nodes), F32),
             jax.ShapeDtypeStruct((1, 1), F32)]
    kappa, curv_loss = pl.pallas_call(
        functools.partial(_curvature_kernel, n_edges=n_edges,
                          chunk=chunk, n_chunks=n_chunks),
        out_shape=a_out,
        scratch_shapes=[pltpu.VMEM((n_nodes, 1), F32)],
        compiler_params=pltpu.CompilerParams(
            vmem_limit_bytes=_vmem_limit_bytes(a_args, a_out)),
    )(*a_args)

    # ---- data-dependent glue: top-k node removal -> per-layer keep vectors ---
    # remove_top_k_neighbors_with_mask accumulates removals across layers; since
    # the top-k sets are nested, masking with the layer's own top-int(N*p*l/100)
    # set is equivalent (edges touching a removed node are zeroed).
    adj = jnp.zeros((n_nodes, n_nodes), F32).at[dst, src].add(1.0).astype(BF16)
    kflat = kappa.reshape(-1)
    keeps = []
    for layer in range(nlayers):
        num_remove = int(n_nodes * (p * layer) / 100)
        if num_remove > 0:
            _, top_idx = lax.top_k(kflat, num_remove)
            keep = jnp.ones((n_nodes,), F32).at[top_idx].set(0.0)
        else:
            keep = jnp.ones((n_nodes,), F32)
        keeps.append(keep)
    keep_all = jnp.stack(keeps, axis=0)[:, :, None]               # (L, N, 1)

    # global mean pool matrix
    onehot = (batch_idx[None, :] == jnp.arange(n_graphs)[:, None]).astype(F32)
    counts = jnp.maximum(jnp.sum(onehot, axis=1, keepdims=True), 1.0)
    pool_mat = onehot / counts                                    # (G, N)

    # ---- Kernel B: embedding + GIN stack + pool + prediction head -----------
    b_args = (h_in, params["emb_w"], params["emb_b"], adj, keep_all,
              params["gw1"], params["gb1"], params["gw2"], params["gb2"],
              params["bng"], params["bnb"],
              pool_mat, params["pw"], params["pb"], params["f2w"], params["f2b"])
    b_out = jax.ShapeDtypeStruct((n_graphs, nclass), F32)
    out = pl.pallas_call(
        functools.partial(_gnn_kernel, nlayers=nlayers),
        out_shape=b_out,
        compiler_params=pltpu.CompilerParams(
            vmem_limit_bytes=_vmem_limit_bytes(b_args, [b_out])),
    )(*b_args)

    return out, curv_loss[0, 0]


if __name__ == "__main__":
    key = jax.random.PRNGKey(0)
    n_nodes, n_edges, n_graphs = 32, 64, 4
    nfeat, nhid, nlayers, nclass, multiplier = 8, 32, 2, 1, 2

    k_h, k_x, k_e, k_attr, k_p = jax.random.split(key, 5)
    h_in = jax.random.normal(k_h, (n_nodes, nfeat), F32)
    x = jax.random.normal(k_x, (n_nodes, 1), F32)                 # batched_data.x
    edge_index = jax.random.randint(k_e, (2, n_edges), 0, n_nodes, dtype=jnp.int32)
    edge_attr = jax.random.normal(k_attr, (n_edges,), F32)
    batch_idx = jnp.repeat(jnp.arange(n_graphs, dtype=jnp.int32),
                           n_nodes // n_graphs)

    params = init_params(k_p, nfeat, nhid, nlayers, nclass, multiplier, n_edges)

    out, curv_loss = gnn_bench_forward(params, h_in, x, edge_index, edge_attr,
                                       batch_idx, n_graphs=n_graphs,
                                       nlayers=nlayers, p=10)
    jax.block_until_ready((out, curv_loss))
    assert out.shape == (n_graphs, nclass)
    assert curv_loss.shape == ()
    print("KERNEL_OK")
</pallas_src>

<mosaic_0001>
module attributes {stable_mosaic.version = 11 : i64} {
  func.func @_curvature_kernel(%arg0: memref<32x1xf32, #tpu.memory_space<vmem>>, %arg1: memref<1x32xf32, #tpu.memory_space<vmem>>, %arg2: memref<64x1xf32, #tpu.memory_space<vmem>>, %arg3: memref<32x128xbf16, #tpu.memory_space<vmem>>, %arg4: memref<20x3xf32, #tpu.memory_space<vmem>>, %arg5: memref<3x20xf32, #tpu.memory_space<vmem>>, %arg6: memref<1x1xf32, #tpu.memory_space<vmem>>, %arg7: memref<60x1xf32, #tpu.memory_space<vmem>>, %arg8: memref<60x1xf32, #tpu.memory_space<vmem>>, %arg9: memref<3x60xf32, #tpu.memory_space<vmem>>, %arg10: memref<3x1xf32, #tpu.memory_space<vmem>>, %arg11: memref<64x64xf32, #tpu.memory_space<vmem>>, %arg12: memref<1x64xf32, #tpu.memory_space<vmem>>, %arg13: memref<64x64xf32, #tpu.memory_space<vmem>>, %arg14: memref<1x64xf32, #tpu.memory_space<vmem>>, %arg15: memref<64x64xf32, #tpu.memory_space<vmem>>, %arg16: memref<1x64xf32, #tpu.memory_space<vmem>>, %arg17: memref<1x32xf32, #tpu.memory_space<vmem>>, %arg18: memref<1x1xf32, #tpu.memory_space<vmem>>, %arg19: memref<32x1xf32, #tpu.memory_space<vmem>>) attributes {dimension_semantics = [], scalar_prefetch = 0 : i64, scratch_operands = 1 : i64, tpu.core_type = #tpu.core_type<tc>} {
    %c0 = arith.constant 0 : index
    %c0_0 = arith.constant 0 : index
    %0 = vector.load %arg0[%c0, %c0_0] : memref<32x1xf32, #tpu.memory_space<vmem>>, vector<32x1xf32>
    %c0_1 = arith.constant 0 : index
    %c0_2 = arith.constant 0 : index
    %1 = vector.load %arg1[%c0_1, %c0_2] : memref<1x32xf32, #tpu.memory_space<vmem>>, vector<1x32xf32>
    %c0_3 = arith.constant 0 : index
    %c0_4 = arith.constant 0 : index
    %2 = vector.load %arg6[%c0_3, %c0_4] : memref<1x1xf32, #tpu.memory_space<vmem>>, vector<1x1xf32>
    %c0_5 = arith.constant 0 : index
    %c0_6 = arith.constant 0 : index
    %3 = vector.load %arg5[%c0_5, %c0_6] : memref<3x20xf32, #tpu.memory_space<vmem>>, vector<1x20xf32>
    %c1 = arith.constant 1 : index
    %c0_7 = arith.constant 0 : index
    %4 = vector.load %arg5[%c1, %c0_7] : memref<3x20xf32, #tpu.memory_space<vmem>>, vector<1x20xf32>
    %c2 = arith.constant 2 : index
    %c0_8 = arith.constant 0 : index
    %5 = vector.load %arg5[%c2, %c0_8] : memref<3x20xf32, #tpu.memory_space<vmem>>, vector<1x20xf32>
    %6 = vector.broadcast %0 : vector<32x1xf32> to vector<32x20xf32>
    %7 = vector.broadcast %3 : vector<1x20xf32> to vector<32x20xf32>
    %8 = arith.mulf %6, %7 : vector<32x20xf32>
    %9 = vector.broadcast %4 : vector<1x20xf32> to vector<32x20xf32>
    %10 = arith.addf %8, %9 : vector<32x20xf32>
    %cst = arith.constant 0.000000e+00 : f32
    %11 = vector.broadcast %cst : f32 to vector<32x20xf32>
    %12 = arith.maximumf %10, %11 : vector<32x20xf32>
    %13 = vector.broadcast %5 : vector<1x20xf32> to vector<32x20xf32>
    %14 = arith.mulf %12, %13 : vector<32x20xf32>
    %cst_9 = arith.constant dense<0.000000e+00> : vector<32xf32>
    %15 = vector.multi_reduction <add>, %14, %cst_9 [1] : vector<32x20xf32> to vector<32xf32>
    %16 = vector.shape_cast %15 : vector<32xf32> to vector<32x1xf32>
    %17 = vector.broadcast %2 : vector<1x1xf32> to vector<32x1xf32>
    %18 = arith.addf %16, %17 : vector<32x1xf32>
    %19 = arith.negf %18 : vector<32x1xf32>
    %20 = math.exp %19 : vector<32x1xf32>
    %cst_10 = arith.constant 1.000000e+00 : f32
    %21 = vector.broadcast %cst_10 : f32 to vector<32x1xf32>
    %22 = arith.addf %21, %20 : vector<32x1xf32>
    %23 = arith.divf %21, %22 : vector<32x1xf32>
    %c0_11 = arith.constant 0 : index
    %c0_12 = arith.constant 0 : index
    %24 = vector.load %arg19[%c0_11, %c0_12] : memref<32x1xf32, #tpu.memory_space<vmem>>, vector<32x1xf32>
    tpu.vector_store %arg19[%c0_11, %c0_12], %23 {strides = array<i32>} : memref<32x1xf32, #tpu.memory_space<vmem>>, vector<32x1xf32>,
    %c0_13 = arith.constant 0 : index
    %c0_14 = arith.constant 0 : index
    %25 = vector.load %arg4[%c0_13, %c0_14] : memref<20x3xf32, #tpu.memory_space<vmem>>, vector<20x1xf32>
    %c0_15 = arith.constant 0 : index
    %c1_16 = arith.constant 1 : index
    %26 = vector.load %arg4[%c0_15, %c1_16] : memref<20x3xf32, #tpu.memory_space<vmem>>, vector<20x1xf32>
    %c0_17 = arith.constant 0 : index
    %c2_18 = arith.constant 2 : index
    %27 = vector.load %arg4[%c0_17, %c2_18] : memref<20x3xf32, #tpu.memory_space<vmem>>, vector<20x1xf32>
    %28 = vector.broadcast %25 : vector<20x1xf32> to vector<20x32xf32>
    %29 = vector.broadcast %1 : vector<1x32xf32> to vector<20x32xf32>
    %30 = arith.mulf %28, %29 : vector<20x32xf32>
    %31 = vector.broadcast %26 : vector<20x1xf32> to vector<20x32xf32>
    %32 = arith.addf %30, %31 : vector<20x32xf32>
    %cst_19 = arith.constant 0.000000e+00 : f32
    %33 = vector.broadcast %cst_19 : f32 to vector<20x32xf32>
    %34 = arith.maximumf %32, %33 : vector<20x32xf32>
    %35 = vector.broadcast %27 : vector<20x1xf32> to vector<20x32xf32>
    %36 = arith.mulf %35, %34 : vector<20x32xf32>
    %cst_20 = arith.constant dense<0.000000e+00> : vector<32xf32>
    %37 = vector.multi_reduction <add>, %36, %cst_20 [0] : vector<20x32xf32> to vector<32xf32>
    %38 = vector.shape_cast %37 : vector<32xf32> to vector<1x32xf32>
    %39 = vector.broadcast %2 : vector<1x1xf32> to vector<1x32xf32>
    %40 = arith.addf %38, %39 : vector<1x32xf32>
    %41 = arith.negf %40 : vector<1x32xf32>
    %42 = math.exp %41 : vector<1x32xf32>
    %cst_21 = arith.constant 1.000000e+00 : f32
    %43 = vector.broadcast %cst_21 : f32 to vector<1x32xf32>
    %44 = arith.addf %43, %42 : vector<1x32xf32>
    %45 = arith.divf %43, %44 : vector<1x32xf32>
    %c0_22 = arith.constant 0 : index
    %c0_23 = arith.constant 0 : index
    %46 = vector.load %arg17[%c0_22, %c0_23] : memref<1x32xf32, #tpu.memory_space<vmem>>, vector<1x32xf32>
    tpu.vector_store %arg17[%c0_22, %c0_23], %45 {strides = array<i32>} : memref<1x32xf32, #tpu.memory_space<vmem>>, vector<1x32xf32>,
    %c0_24 = arith.constant 0 : index
    %c0_25 = arith.constant 0 : index
    %47 = vector.load %arg7[%c0_24, %c0_25] : memref<60x1xf32, #tpu.memory_space<vmem>>, vector<60x1xf32>
    %48 = vector.broadcast %47 : vector<60x1xf32> to vector<60x32xf32>
    %49 = vector.broadcast %1 : vector<1x32xf32> to vector<60x32xf32>
    %50 = arith.mulf %48, %49 : vector<60x32xf32>
    %c0_26 = arith.constant 0 : index
    %c0_27 = arith.constant 0 : index
    %51 = vector.load %arg8[%c0_26, %c0_27] : memref<60x1xf32, #tpu.memory_space<vmem>>, vector<60x1xf32>
    %52 = vector.broadcast %51 : vector<60x1xf32> to vector<60x32xf32>
    %53 = arith.addf %50, %52 : vector<60x32xf32>
    %cst_28 = arith.constant 0.000000e+00 : f32
    %54 = vector.broadcast %cst_28 : f32 to vector<60x32xf32>
    %55 = arith.maximumf %53, %54 : vector<60x32xf32>
    %c0_29 = arith.constant 0 : index
    %c0_30 = arith.constant 0 : index
    %56 = vector.load %arg9[%c0_29, %c0_30] : memref<3x60xf32, #tpu.memory_space<vmem>>, vector<3x60xf32>
    %cst_31 = arith.constant dense<0.000000e+00> : vector<3x32xf32>
    %57 = tpu.matmul %56, %55, %cst_31 {dimension_numbers = #tpu.dot_dimension_numbers<[1], [0], [0], [1], [0, 0, 1, 1], [], []>} : vector<3x60xf32>, vector<60x32xf32>, vector<3x32xf32> -> vector<3x32xf32>
    %c0_32 = arith.constant 0 : index
    %c0_33 = arith.constant 0 : index
    %58 = vector.load %arg10[%c0_32, %c0_33] : memref<3x1xf32, #tpu.memory_space<vmem>>, vector<3x1xf32>
    %59 = vector.broadcast %58 : vector<3x1xf32> to vector<3x32xf32>
    %60 = arith.addf %57, %59 : vector<3x32xf32>
    %61 = arith.negf %60 : vector<3x32xf32>
    %62 = math.exp %61 : vector<3x32xf32>
    %cst_34 = arith.constant 1.000000e+00 : f32
    %63 = vector.broadcast %cst_34 : f32 to vector<3x32xf32>
    %64 = arith.addf %63, %62 : vector<3x32xf32>
    %65 = arith.divf %63, %64 : vector<3x32xf32>
    %c0_35 = arith.constant 0 : index
    %c0_36 = arith.constant 0 : index
    %66 = vector.load %arg2[%c0_35, %c0_36] : memref<64x1xf32, #tpu.memory_space<vmem>>, vector<64x1xf32>
    %c0_37 = arith.constant 0 : index
    %c0_38 = arith.constant 0 : index
    %67 = vector.load %arg11[%c0_37, %c0_38] : memref<64x64xf32, #tpu.memory_space<vmem>>, vector<64x64xf32>
    %68 = vector.broadcast %66 : vector<64x1xf32> to vector<64x64xf32>
    %69 = arith.mulf %68, %67 : vector<64x64xf32>
    %cst_39 = arith.constant dense<0.000000e+00> : vector<64xf32>
    %70 = vector.multi_reduction <add>, %69, %cst_39 [0] : vector<64x64xf32> to vector<64xf32>
    %71 = vector.shape_cast %70 : vector<64xf32> to vector<1x64xf32>
    %c0_40 = arith.constant 0 : index
    %c0_41 = arith.constant 0 : index
    %72 = vector.load %arg12[%c0_40, %c0_41] : memref<1x64xf32, #tpu.memory_space<vmem>>, vector<1x64xf32>
    %73 = arith.addf %71, %72 : vector<1x64xf32>
    %cst_42 = arith.constant 0.000000e+00 : f32
    %74 = vector.broadcast %cst_42 : f32 to vector<1x64xf32>
    %75 = arith.maximumf %73, %74 : vector<1x64xf32>
    %c0_43 = arith.constant 0 : index
    %c0_44 = arith.constant 0 : index
    %76 = vector.load %arg13[%c0_43, %c0_44] : memref<64x64xf32, #tpu.memory_space<vmem>>, vector<64x64xf32>
    %cst_45 = arith.constant dense<0.000000e+00> : vector<1x64xf32>
    %77 = tpu.matmul %75, %76, %cst_45 {dimension_numbers = #tpu.dot_dimension_numbers<[1], [0], [0], [1], [0, 0, 1, 1], [], []>} : vector<1x64xf32>, vector<64x64xf32>, vector<1x64xf32> -> vector<1x64xf32>
    %c0_46 = arith.constant 0 : index
    %c0_47 = arith.constant 0 : index
    %78 = vector.load %arg14[%c0_46, %c0_47] : memref<1x64xf32, #tpu.memory_space<vmem>>, vector<1x64xf32>
    %79 = arith.addf %77, %78 : vector<1x64xf32>
    %cst_48 = arith.constant 0.000000e+00 : f32
    %80 = vector.broadcast %cst_48 : f32 to vector<1x64xf32>
    %81 = arith.maximumf %79, %80 : vector<1x64xf32>
    %c0_49 = arith.constant 0 : index
    %c0_50 = arith.constant 0 : index
    %82 = vector.load %arg15[%c0_49, %c0_50] : memref<64x64xf32, #tpu.memory_space<vmem>>, vector<64x64xf32>
    %cst_51 = arith.constant dense<0.000000e+00> : vector<1x64xf32>
    %83 = tpu.matmul %81, %82, %cst_51 {dimension_numbers = #tpu.dot_dimension_numbers<[1], [0], [0], [1], [0, 0, 1, 1], [], []>} : vector<1x64xf32>, vector<64x64xf32>, vector<1x64xf32> -> vector<1x64xf32>
    %c0_52 = arith.constant 0 : index
    %c0_53 = arith.constant 0 : index
    %84 = vector.load %arg16[%c0_52, %c0_53] : memref<1x64xf32, #tpu.memory_space<vmem>>, vector<1x64xf32>
    %85 = arith.addf %83, %84 : vector<1x64xf32>
    %86 = arith.negf %85 : vector<1x64xf32>
    %87 = math.exp %86 : vector<1x64xf32>
    %cst_54 = arith.constant 1.000000e+00 : f32
    %88 = vector.broadcast %cst_54 : f32 to vector<1x64xf32>
    %89 = arith.addf %88, %87 : vector<1x64xf32>
    %90 = arith.divf %88, %89 : vector<1x64xf32>
    %c0_55 = arith.constant 0 : index
    %c0_56 = arith.constant 0 : index
    %91 = vector.load %arg3[%c0_55, %c0_56] : memref<32x128xbf16, #tpu.memory_space<vmem>>, vector<32x128xbf16>
    %92 = vector.extract_strided_slice %91 {offsets = [0, 0], sizes = [32, 64], strides = [1, 1]} : vector<32x128xbf16> to vector<32x64xbf16>
    %93 = arith.truncf %65 : vector<3x32xf32> to vector<3x32xbf16>
    %cst_57 = arith.constant dense<0.000000e+00> : vector<3x128xf32>
    %94 = tpu.matmul %93, %91, %cst_57 {dimension_numbers = #tpu.dot_dimension_numbers<[1], [0], [0], [1], [0, 0, 1, 1], [], []>} : vector<3x32xbf16>, vector<32x128xbf16>, vector<3x128xf32> -> vector<3x128xf32>
    %95 = vector.extract_strided_slice %94 {offsets = [0, 0], sizes = [3, 64], strides = [1, 1]} : vector<3x128xf32> to vector<3x64xf32>
    %96 = vector.extract_strided_slice %94 {offsets = [0, 64], sizes = [3, 64], strides = [1, 1]} : vector<3x128xf32> to vector<3x64xf32>
    %97 = arith.subf %96, %95 : vector<3x64xf32>
    %98 = vector.broadcast %90 : vector<1x64xf32> to vector<3x64xf32>
    %99 = arith.mulf %98, %97 : vector<3x64xf32>
    %100 = arith.truncf %99 : vector<3x64xf32> to vector<3x64xbf16>
    %cst_58 = arith.constant dense<0.000000e+00> : vector<3x32xf32>
    %101 = tpu.matmul %100, %92, %cst_58 {dimension_numbers = #tpu.dot_dimension_numbers<[1], [1], [0], [0], [0, 0, 1, 0], [], []>} : vector<3x64xbf16>, vector<32x64xbf16>, vector<3x32xf32> -> vector<3x32xf32>
    %102 = arith.mulf %99, %97 : vector<3x64xf32>
    %103 = arith.truncf %102 : vector<3x64xf32> to vector<3x64xbf16>
    %cst_59 = arith.constant dense<0.000000e+00> : vector<3x32xf32>
    %104 = tpu.matmul %103, %92, %cst_59 {dimension_numbers = #tpu.dot_dimension_numbers<[1], [1], [0], [0], [0, 0, 1, 0], [], []>} : vector<3x64xbf16>, vector<32x64xbf16>, vector<3x32xf32> -> vector<3x32xf32>
    %cst_60 = arith.constant 5.000000e-01 : f32
    %105 = vector.broadcast %cst_60 : f32 to vector<3x32xf32>
    %106 = arith.mulf %105, %104 : vector<3x32xf32>
    %107 = arith.truncf %106 : vector<3x32xf32> to vector<3x32xbf16>
    %cst_61 = arith.constant dense<0.000000e+00> : vector<3x128xf32>
    %108 = tpu.matmul %107, %91, %cst_61 {dimension_numbers = #tpu.dot_dimension_numbers<[1], [0], [0], [1], [0, 0, 1, 1], [], []>} : vector<3x32xbf16>, vector<32x128xbf16>, vector<3x128xf32> -> vector<3x128xf32>
    %109 = arith.truncf %101 : vector<3x32xf32> to vector<3x32xbf16>
    %cst_62 = arith.constant dense<0.000000e+00> : vector<3x128xf32>
    %110 = tpu.matmul %109, %91, %cst_62 {dimension_numbers = #tpu.dot_dimension_numbers<[1], [0], [0], [1], [0, 0, 1, 1], [], []>} : vector<3x32xbf16>, vector<32x128xbf16>, vector<3x128xf32> -> vector<3x128xf32>
    %111 = vector.extract_strided_slice %108 {offsets = [0, 64], sizes = [3, 64], strides = [1, 1]} : vector<3x128xf32> to vector<3x64xf32>
    %112 = vector.extract_strided_slice %108 {offsets = [0, 0], sizes = [3, 64], strides = [1, 1]} : vector<3x128xf32> to vector<3x64xf32>
    %113 = arith.subf %111, %112 : vector<3x64xf32>
    %114 = vector.broadcast %90 : vector<1x64xf32> to vector<3x64xf32>
    %115 = arith.mulf %114, %113 : vector<3x64xf32>
    %116 = arith.truncf %115 : vector<3x64xf32> to vector<3x64xbf16>
    %cst_63 = arith.constant dense<0.000000e+00> : vector<3x32xf32>
    %117 = tpu.matmul %116, %92, %cst_63 {dimension_numbers = #tpu.dot_dimension_numbers<[1], [1], [0], [0], [0, 0, 1, 0], [], []>} : vector<3x64xbf16>, vector<32x64xbf16>, vector<3x32xf32> -> vector<3x32xf32>
    %118 = vector.extract_strided_slice %110 {offsets = [0, 64], sizes = [3, 64], strides = [1, 1]} : vector<3x128xf32> to vector<3x64xf32>
    %119 = vector.extract_strided_slice %110 {offsets = [0, 0], sizes = [3, 64], strides = [1, 1]} : vector<3x128xf32> to vector<3x64xf32>
    %120 = arith.subf %118, %119 : vector<3x64xf32>
    %121 = arith.mulf %99, %120 : vector<3x64xf32>
    %122 = arith.truncf %121 : vector<3x64xf32> to vector<3x64xbf16>
    %cst_64 = arith.constant dense<0.000000e+00> : vector<3x32xf32>
    %123 = tpu.matmul %122, %92, %cst_64 {dimension_numbers = #tpu.dot_dimension_numbers<[1], [1], [0], [0], [0, 0, 1, 0], [], []>} : vector<3x64xbf16>, vector<32x64xbf16>, vector<3x32xf32> -> vector<3x32xf32>
    %cst_65 = arith.constant 5.000000e-01 : f32
    %124 = vector.broadcast %cst_65 : f32 to vector<3x32xf32>
    %125 = arith.mulf %124, %123 : vector<3x32xf32>
    %cst_66 = arith.constant 5.000000e-01 : f32
    %126 = vector.broadcast %cst_66 : f32 to vector<3x32xf32>
    %127 = arith.mulf %126, %117 : vector<3x32xf32>
    %128 = arith.subf %127, %125 : vector<3x32xf32>
    %cst_67 = arith.constant 0.000000e+00 : f32
    %129 = vector.broadcast %cst_67 : f32 to vector<1x1xf32>
    %c0_i32 = arith.constant 0 : i32
    %c32_i32 = arith.constant 32 : i32
    %130 = arith.muli %c0_i32, %c32_i32 : i32
    %131 = tpu.assume_multiple %130, 32 : i32
    %132 = arith.index_cast %131 : i32 to index
    %c0_68 = arith.constant 0 : index
    %133 = vector.load %arg19[%132, %c0_68] : memref<32x1xf32, #tpu.memory_space<vmem>>, vector<32x1xf32>
    %134 = vector.extract_strided_slice %106 {offsets = [0, 0], sizes = [1, 32], strides = [1, 1]} : vector<3x32xf32> to vector<1x32xf32>
    %135 = vector.broadcast %133 : vector<32x1xf32> to vector<32x32xf32>
    %136 = vector.broadcast %134 : vector<1x32xf32> to vector<32x32xf32>
    %137 = arith.mulf %135, %136 : vector<32x32xf32>
    %138 = vector.extract_strided_slice %128 {offsets = [0, 0], sizes = [1, 32], strides = [1, 1]} : vector<3x32xf32> to vector<1x32xf32>
    %139 = vector.broadcast %138 : vector<1x32xf32> to vector<32x32xf32>
    %140 = arith.subf %137, %139 : vector<32x32xf32>
    %cst_69 = arith.constant 0.000000e+00 : f32
    %141 = vector.broadcast %cst_69 : f32 to vector<32x32xf32>
    %142 = arith.maximumf %140, %141 : vector<32x32xf32>
    %cst_70 = arith.constant dense<0.000000e+00> : vector<32xf32>
    %143 = vector.multi_reduction <add>, %142, %cst_70 [1] : vector<32x32xf32> to vector<32xf32>
    %144 = vector.shape_cast %143 : vector<32xf32> to vector<32x1xf32>
    %cst_71 = arith.constant dense<0.000000e+00> : vector<1xf32>
    %145 = vector.multi_reduction <add>, %144, %cst_71 [0] : vector<32x1xf32> to vector<1xf32>
    %146 = vector.shape_cast %145 : vector<1xf32> to vector<1x1xf32>
    %147 = arith.addf %129, %146 : vector<1x1xf32>
    %148 = vector.extract_strided_slice %106 {offsets = [1, 0], sizes = [1, 32], strides = [1, 1]} : vector<3x32xf32> to vector<1x32xf32>
    %149 = vector.broadcast %133 : vector<32x1xf32> to vector<32x32xf32>
    %150 = vector.broadcast %148 : vector<1x32xf32> to vector<32x32xf32>
    %151 = arith.mulf %149, %150 : vector<32x32xf32>
    %152 = vector.extract_strided_slice %128 {offsets = [1, 0], sizes = [1, 32], strides = [1, 1]} : vector<3x32xf32> to vector<1x32xf32>
    %153 = vector.broadcast %152 : vector<1x32xf32> to vector<32x32xf32>
    %154 = arith.subf %151, %153 : vector<32x32xf32>
    %cst_72 = arith.constant 0.000000e+00 : f32
    %155 = vector.broadcast %cst_72 : f32 to vector<32x32xf32>
    %156 = arith.maximumf %154, %155 : vector<32x32xf32>
    %cst_73 = arith.constant dense<0.000000e+00> : vector<32xf32>
    %157 = vector.multi_reduction <add>, %156, %cst_73 [1] : vector<32x32xf32> to vector<32xf32>
    %158 = vector.shape_cast %157 : vector<32xf32> to vector<32x1xf32>
    %cst_74 = arith.constant dense<0.000000e+00> : vector<1xf32>
    %159 = vector.multi_reduction <add>, %158, %cst_74 [0] : vector<32x1xf32> to vector<1xf32>
    %160 = vector.shape_cast %159 : vector<1xf32> to vector<1x1xf32>
    %161 = arith.addf %147, %160 : vector<1x1xf32>
    %162 = vector.extract_strided_slice %106 {offsets = [2, 0], sizes = [1, 32], strides = [1, 1]} : vector<3x32xf32> to vector<1x32xf32>
    %163 = vector.broadcast %133 : vector<32x1xf32> to vector<32x32xf32>
    %164 = vector.broadcast %162 : vector<1x32xf32> to vector<32x32xf32>
    %165 = arith.mulf %163, %164 : vector<32x32xf32>
    %166 = vector.extract_strided_slice %128 {offsets = [2, 0], sizes = [1, 32], strides = [1, 1]} : vector<3x32xf32> to vector<1x32xf32>
    %167 = vector.broadcast %166 : vector<1x32xf32> to vector<32x32xf32>
    %168 = arith.subf %165, %167 : vector<32x32xf32>
    %cst_75 = arith.constant 0.000000e+00 : f32
    %169 = vector.broadcast %cst_75 : f32 to vector<32x32xf32>
    %170 = arith.maximumf %168, %169 : vector<32x32xf32>
    %cst_76 = arith.constant dense<0.000000e+00> : vector<32xf32>
    %171 = vector.multi_reduction <add>, %170, %cst_76 [1] : vector<32x32xf32> to vector<32xf32>
    %172 = vector.shape_cast %171 : vector<32xf32> to vector<32x1xf32>
    %cst_77 = arith.constant dense<0.000000e+00> : vector<1xf32>
    %173 = vector.multi_reduction <add>, %172, %cst_77 [0] : vector<32x1xf32> to vector<1xf32>
    %174 = vector.shape_cast %173 : vector<1xf32> to vector<1x1xf32>
    %175 = arith.addf %161, %174 : vector<1x1xf32>
    %c1_i32 = arith.constant 1 : i32
    %cst_78 = arith.constant dense<0.000000e+00> : vector<1xf32>
    %176 = vector.multi_reduction <add>, %23, %cst_78 [0] : vector<32x1xf32> to vector<1xf32>
    %177 = vector.shape_cast %176 : vector<1xf32> to vector<1x1xf32>
    %cst_79 = arith.constant 3.000000e+00 : f32
    %178 = vector.broadcast %cst_79 : f32 to vector<1x1xf32>
    %179 = arith.mulf %178, %177 : vector<1x1xf32>
    %180 = arith.subf %175, %179 : vector<1x1xf32>
    %c0_80 = arith.constant 0 : index
    %c0_81 = arith.constant 0 : index
    %181 = vector.load %arg18[%c0_80, %c0_81] : memref<1x1xf32, #tpu.memory_space<vmem>>, vector<1x1xf32>
    tpu.vector_store %arg18[%c0_80, %c0_81], %180 {strides = array<i32>} : memref<1x1xf32, #tpu.memory_space<vmem>>, vector<1x1xf32>,
    return
  }
}

module attributes {stable_mosaic.version = 11 : i64} {
  func.func @_gnn_kernel(%arg0: memref<32x8xf32, #tpu.memory_space<vmem>>, %arg1: memref<8x32xf32, #tpu.memory_space<vmem>>, %arg2: memref<1x32xf32, #tpu.memory_space<vmem>>, %arg3: memref<32x32xbf16, #tpu.memory_space<vmem>>, %arg4: memref<2x32x1xf32, #tpu.memory_space<vmem>>, %arg5: memref<2x32x32xf32, #tpu.memory_space<vmem>>, %arg6: memref<2x1x32xf32, #tpu.memory_space<vmem>>, %arg7: memref<2x32x32xf32, #tpu.memory_space<vmem>>, %arg8: memref<2x1x32xf32, #tpu.memory_space<vmem>>, %arg9: memref<2x1x32xf32, #tpu.memory_space<vmem>>, %arg10: memref<2x1x32xf32, #tpu.memory_space<vmem>>, %arg11: memref<4x32xf32, #tpu.memory_space<vmem>>, %arg12: memref<32x64xf32, #tpu.memory_space<vmem>>, %arg13: memref<1x64xf32, #tpu.memory_space<vmem>>, %arg14: memref<64x1xf32, #tpu.memory_space<vmem>>, %arg15: memref<1x1xf32, #tpu.memory_space<vmem>>, %arg16: memref<4x1xf32, #tpu.memory_space<vmem>>) attributes {dimension_semantics = [], scalar_prefetch = 0 : i64, scratch_operands = 0 : i64, tpu.core_type = #tpu.core_type<tc>} {
    %c0 = arith.constant 0 : index
    %c0_0 = arith.constant 0 : index
    %0 = vector.load %arg3[%c0, %c0_0] : memref<32x32xbf16, #tpu.memory_space<vmem>>, vector<32x32xbf16>
    %c0_1 = arith.constant 0 : index
    %c0_2 = arith.constant 0 : index
    %1 = vector.load %arg0[%c0_1, %c0_2] : memref<32x8xf32, #tpu.memory_space<vmem>>, vector<32x8xf32>
    %c0_3 = arith.constant 0 : index
    %c0_4 = arith.constant 0 : index
    %2 = vector.load %arg1[%c0_3, %c0_4] : memref<8x32xf32, #tpu.memory_space<vmem>>, vector<8x32xf32>
    %3 = arith.truncf %1 : vector<32x8xf32> to vector<32x8xbf16>
    %4 = arith.truncf %2 : vector<8x32xf32> to vector<8x32xbf16>
    %cst = arith.constant dense<0.000000e+00> : vector<32x32xf32>
    %5 = tpu.matmul %3, %4, %cst {dimension_numbers = #tpu.dot_dimension_numbers<[1], [0], [0], [1], [0, 0, 1, 1], [], []>} : vector<32x8xbf16>, vector<8x32xbf16>, vector<32x32xf32> -> vector<32x32xf32>
    %c0_5 = arith.constant 0 : index
    %c0_6 = arith.constant 0 : index
    %6 = vector.load %arg2[%c0_5, %c0_6] : memref<1x32xf32, #tpu.memory_space<vmem>>, vector<1x32xf32>
    %7 = vector.broadcast %6 : vector<1x32xf32> to vector<32x32xf32>
    %8 = arith.addf %5, %7 : vector<32x32xf32>
    %c0_i32 = arith.constant 0 : i32
    %9 = arith.index_cast %c0_i32 : i32 to index
    %c0_7 = arith.constant 0 : index
    %c0_8 = arith.constant 0 : index
    %10 = vector.load %arg4[%9, %c0_7, %c0_8] : memref<2x32x1xf32, #tpu.memory_space<vmem>>, vector<1x32x1xf32>
    %11 = vector.shape_cast %10 : vector<1x32x1xf32> to vector<32x1xf32>
    %12 = vector.broadcast %11 : vector<32x1xf32> to vector<32x32xf32>
    %13 = arith.mulf %12, %8 : vector<32x32xf32>
    %14 = arith.truncf %13 : vector<32x32xf32> to vector<32x32xbf16>
    %cst_9 = arith.constant dense<0.000000e+00> : vector<32x32xf32>
    %15 = tpu.matmul %0, %14, %cst_9 {dimension_numbers = #tpu.dot_dimension_numbers<[1], [0], [0], [1], [0, 0, 1, 1], [], []>} : vector<32x32xbf16>, vector<32x32xbf16>, vector<32x32xf32> -> vector<32x32xf32>
    %16 = vector.broadcast %11 : vector<32x1xf32> to vector<32x32xf32>
    %17 = arith.mulf %16, %15 : vector<32x32xf32>
    %18 = arith.addf %8, %17 : vector<32x32xf32>
    %19 = arith.index_cast %c0_i32 : i32 to index
    %c0_10 = arith.constant 0 : index
    %c0_11 = arith.constant 0 : index
    %20 = vector.load %arg5[%19, %c0_10, %c0_11] : memref<2x32x32xf32, #tpu.memory_space<vmem>>, vector<1x32x32xf32>
    %21 = vector.shape_cast %20 : vector<1x32x32xf32> to vector<32x32xf32>
    %22 = arith.truncf %18 : vector<32x32xf32> to vector<32x32xbf16>
    %23 = arith.truncf %21 : vector<32x32xf32> to vector<32x32xbf16>
    %cst_12 = arith.constant dense<0.000000e+00> : vector<32x32xf32>
    %24 = tpu.matmul %22, %23, %cst_12 {dimension_numbers = #tpu.dot_dimension_numbers<[1], [0], [0], [1], [0, 0, 1, 1], [], []>} : vector<32x32xbf16>, vector<32x32xbf16>, vector<32x32xf32> -> vector<32x32xf32>
    %25 = arith.index_cast %c0_i32 : i32 to index
    %c0_13 = arith.constant 0 : index
    %c0_14 = arith.constant 0 : index
    %26 = vector.load %arg6[%25, %c0_13, %c0_14] : memref<2x1x32xf32, #tpu.memory_space<vmem>>, vector<1x1x32xf32>
    %27 = vector.shape_cast %26 : vector<1x1x32xf32> to vector<1x32xf32>
    %28 = vector.broadcast %27 : vector<1x32xf32> to vector<32x32xf32>
    %29 = arith.addf %24, %28 : vector<32x32xf32>
    %cst_15 = arith.constant 0.000000e+00 : f32
    %30 = vector.broadcast %cst_15 : f32 to vector<32x32xf32>
    %31 = arith.maximumf %29, %30 : vector<32x32xf32>
    %32 = arith.index_cast %c0_i32 : i32 to index
    %c0_16 = arith.constant 0 : index
    %c0_17 = arith.constant 0 : index
    %33 = vector.load %arg7[%32, %c0_16, %c0_17] : memref<2x32x32xf32, #tpu.memory_space<vmem>>, vector<1x32x32xf32>
    %34 = vector.shape_cast %33 : vector<1x32x32xf32> to vector<32x32xf32>
    %35 = arith.truncf %31 : vector<32x32xf32> to vector<32x32xbf16>
    %36 = arith.truncf %34 : vector<32x32xf32> to vector<32x32xbf16>
    %cst_18 = arith.constant dense<0.000000e+00> : vector<32x32xf32>
    %37 = tpu.matmul %35, %36, %cst_18 {dimension_numbers = #tpu.dot_dimension_numbers<[1], [0], [0], [1], [0, 0, 1, 1], [], []>} : vector<32x32xbf16>, vector<32x32xbf16>, vector<32x32xf32> -> vector<32x32xf32>
    %38 = arith.index_cast %c0_i32 : i32 to index
    %c0_19 = arith.constant 0 : index
    %c0_20 = arith.constant 0 : index
    %39 = vector.load %arg8[%38, %c0_19, %c0_20] : memref<2x1x32xf32, #tpu.memory_space<vmem>>, vector<1x1x32xf32>
    %40 = vector.shape_cast %39 : vector<1x1x32xf32> to vector<1x32xf32>
    %41 = vector.broadcast %40 : vector<1x32xf32> to vector<32x32xf32>
    %42 = arith.addf %37, %41 : vector<32x32xf32>
    %cst_21 = arith.constant dense<0.000000e+00> : vector<32xf32>
    %43 = vector.multi_reduction <add>, %42, %cst_21 [0] : vector<32x32xf32> to vector<32xf32>
    %44 = vector.shape_cast %43 : vector<32xf32> to vector<1x32xf32>
    %cst_22 = arith.constant 3.200000e+01 : f32
    %45 = vector.broadcast %cst_22 : f32 to vector<1x32xf32>
    %46 = arith.divf %44, %45 : vector<1x32xf32>
    %47 = vector.broadcast %46 : vector<1x32xf32> to vector<32x32xf32>
    %48 = arith.subf %42, %47 : vector<32x32xf32>
    %49 = arith.mulf %48, %48 : vector<32x32xf32>
    %cst_23 = arith.constant dense<0.000000e+00> : vector<32xf32>
    %50 = vector.multi_reduction <add>, %49, %cst_23 [0] : vector<32x32xf32> to vector<32xf32>
    %51 = vector.shape_cast %50 : vector<32xf32> to vector<1x32xf32>
    %cst_24 = arith.constant 3.200000e+01 : f32
    %52 = vector.broadcast %cst_24 : f32 to vector<1x32xf32>
    %53 = arith.divf %51, %52 : vector<1x32xf32>
    %54 = vector.broadcast %46 : vector<1x32xf32> to vector<32x32xf32>
    %55 = arith.subf %42, %54 : vector<32x32xf32>
    %cst_25 = arith.constant 9.99999974E-6 : f32
    %56 = vector.broadcast %cst_25 : f32 to vector<1x32xf32>
    %57 = arith.addf %53, %56 : vector<1x32xf32>
    %58 = math.rsqrt %57 : vector<1x32xf32>
    %59 = vector.broadcast %58 : vector<1x32xf32> to vector<32x32xf32>
    %60 = arith.mulf %55, %59 : vector<32x32xf32>
    %61 = arith.index_cast %c0_i32 : i32 to index
    %c0_26 = arith.constant 0 : index
    %c0_27 = arith.constant 0 : index
    %62 = vector.load %arg9[%61, %c0_26, %c0_27] : memref<2x1x32xf32, #tpu.memory_space<vmem>>, vector<1x1x32xf32>
    %63 = vector.shape_cast %62 : vector<1x1x32xf32> to vector<1x32xf32>
    %64 = vector.broadcast %63 : vector<1x32xf32> to vector<32x32xf32>
    %65 = arith.mulf %60, %64 : vector<32x32xf32>
    %66 = arith.index_cast %c0_i32 : i32 to index
    %c0_28 = arith.constant 0 : index
    %c0_29 = arith.constant 0 : index
    %67 = vector.load %arg10[%66, %c0_28, %c0_29] : memref<2x1x32xf32, #tpu.memory_space<vmem>>, vector<1x1x32xf32>
    %68 = vector.shape_cast %67 : vector<1x1x32xf32> to vector<1x32xf32>
    %69 = vector.broadcast %68 : vector<1x32xf32> to vector<32x32xf32>
    %70 = arith.addf %65, %69 : vector<32x32xf32>
    %cst_30 = arith.constant 0.000000e+00 : f32
    %71 = vector.broadcast %cst_30 : f32 to vector<32x32xf32>
    %72 = arith.maximumf %70, %71 : vector<32x32xf32>
    %73 = arith.addf %72, %8 : vector<32x32xf32>
    %c1_i32 = arith.constant 1 : i32
    %74 = arith.index_cast %c1_i32 : i32 to index
    %c0_31 = arith.constant 0 : index
    %c0_32 = arith.constant 0 : index
    %75 = vector.load %arg4[%74, %c0_31, %c0_32] : memref<2x32x1xf32, #tpu.memory_space<vmem>>, vector<1x32x1xf32>
    %76 = vector.shape_cast %75 : vector<1x32x1xf32> to vector<32x1xf32>
    %77 = vector.broadcast %76 : vector<32x1xf32> to vector<32x32xf32>
    %78 = arith.mulf %77, %73 : vector<32x32xf32>
    %79 = arith.truncf %78 : vector<32x32xf32> to vector<32x32xbf16>
    %cst_33 = arith.constant dense<0.000000e+00> : vector<32x32xf32>
    %80 = tpu.matmul %0, %79, %cst_33 {dimension_numbers = #tpu.dot_dimension_numbers<[1], [0], [0], [1], [0, 0, 1, 1], [], []>} : vector<32x32xbf16>, vector<32x32xbf16>, vector<32x32xf32> -> vector<32x32xf32>
    %81 = vector.broadcast %76 : vector<32x1xf32> to vector<32x32xf32>
    %82 = arith.mulf %81, %80 : vector<32x32xf32>
    %83 = arith.addf %73, %82 : vector<32x32xf32>
    %84 = arith.index_cast %c1_i32 : i32 to index
    %c0_34 = arith.constant 0 : index
    %c0_35 = arith.constant 0 : index
    %85 = vector.load %arg5[%84, %c0_34, %c0_35] : memref<2x32x32xf32, #tpu.memory_space<vmem>>, vector<1x32x32xf32>
    %86 = vector.shape_cast %85 : vector<1x32x32xf32> to vector<32x32xf32>
    %87 = arith.truncf %83 : vector<32x32xf32> to vector<32x32xbf16>
    %88 = arith.truncf %86 : vector<32x32xf32> to vector<32x32xbf16>
    %cst_36 = arith.constant dense<0.000000e+00> : vector<32x32xf32>
    %89 = tpu.matmul %87, %88, %cst_36 {dimension_numbers = #tpu.dot_dimension_numbers<[1], [0], [0], [1], [0, 0, 1, 1], [], []>} : vector<32x32xbf16>, vector<32x32xbf16>, vector<32x32xf32> -> vector<32x32xf32>
    %90 = arith.index_cast %c1_i32 : i32 to index
    %c0_37 = arith.constant 0 : index
    %c0_38 = arith.constant 0 : index
    %91 = vector.load %arg6[%90, %c0_37, %c0_38] : memref<2x1x32xf32, #tpu.memory_space<vmem>>, vector<1x1x32xf32>
    %92 = vector.shape_cast %91 : vector<1x1x32xf32> to vector<1x32xf32>
    %93 = vector.broadcast %92 : vector<1x32xf32> to vector<32x32xf32>
    %94 = arith.addf %89, %93 : vector<32x32xf32>
    %cst_39 = arith.constant 0.000000e+00 : f32
    %95 = vector.broadcast %cst_39 : f32 to vector<32x32xf32>
    %96 = arith.maximumf %94, %95 : vector<32x32xf32>
    %97 = arith.index_cast %c1_i32 : i32 to index
    %c0_40 = arith.constant 0 : index
    %c0_41 = arith.constant 0 : index
    %98 = vector.load %arg7[%97, %c0_40, %c0_41] : memref<2x32x32xf32, #tpu.memory_space<vmem>>, vector<1x32x32xf32>
    %99 = vector.shape_cast %98 : vector<1x32x32xf32> to vector<32x32xf32>
    %100 = arith.truncf %96 : vector<32x32xf32> to vector<32x32xbf16>
    %101 = arith.truncf %99 : vector<32x32xf32> to vector<32x32xbf16>
    %cst_42 = arith.constant dense<0.000000e+00> : vector<32x32xf32>
    %102 = tpu.matmul %100, %101, %cst_42 {dimension_numbers = #tpu.dot_dimension_numbers<[1], [0], [0], [1], [0, 0, 1, 1], [], []>} : vector<32x32xbf16>, vector<32x32xbf16>, vector<32x32xf32> -> vector<32x32xf32>
    %103 = arith.index_cast %c1_i32 : i32 to index
    %c0_43 = arith.constant 0 : index
    %c0_44 = arith.constant 0 : index
    %104 = vector.load %arg8[%103, %c0_43, %c0_44] : memref<2x1x32xf32, #tpu.memory_space<vmem>>, vector<1x1x32xf32>
    %105 = vector.shape_cast %104 : vector<1x1x32xf32> to vector<1x32xf32>
    %106 = vector.broadcast %105 : vector<1x32xf32> to vector<32x32xf32>
    %107 = arith.addf %102, %106 : vector<32x32xf32>
    %cst_45 = arith.constant dense<0.000000e+00> : vector<32xf32>
    %108 = vector.multi_reduction <add>, %107, %cst_45 [0] : vector<32x32xf32> to vector<32xf32>
    %109 = vector.shape_cast %108 : vector<32xf32> to vector<1x32xf32>
    %cst_46 = arith.constant 3.200000e+01 : f32
    %110 = vector.broadcast %cst_46 : f32 to vector<1x32xf32>
    %111 = arith.divf %109, %110 : vector<1x32xf32>
    %112 = vector.broadcast %111 : vector<1x32xf32> to vector<32x32xf32>
    %113 = arith.subf %107, %112 : vector<32x32xf32>
    %114 = arith.mulf %113, %113 : vector<32x32xf32>
    %cst_47 = arith.constant dense<0.000000e+00> : vector<32xf32>
    %115 = vector.multi_reduction <add>, %114, %cst_47 [0] : vector<32x32xf32> to vector<32xf32>
    %116 = vector.shape_cast %115 : vector<32xf32> to vector<1x32xf32>
    %cst_48 = arith.constant 3.200000e+01 : f32
    %117 = vector.broadcast %cst_48 : f32 to vector<1x32xf32>
    %118 = arith.divf %116, %117 : vector<1x32xf32>
    %119 = vector.broadcast %111 : vector<1x32xf32> to vector<32x32xf32>
    %120 = arith.subf %107, %119 : vector<32x32xf32>
    %cst_49 = arith.constant 9.99999974E-6 : f32
    %121 = vector.broadcast %cst_49 : f32 to vector<1x32xf32>
    %122 = arith.addf %118, %121 : vector<1x32xf32>
    %123 = math.rsqrt %122 : vector<1x32xf32>
    %124 = vector.broadcast %123 : vector<1x32xf32> to vector<32x32xf32>
    %125 = arith.mulf %120, %124 : vector<32x32xf32>
    %126 = arith.index_cast %c1_i32 : i32 to index
    %c0_50 = arith.constant 0 : index
    %c0_51 = arith.constant 0 : index
    %127 = vector.load %arg9[%126, %c0_50, %c0_51] : memref<2x1x32xf32, #tpu.memory_space<vmem>>, vector<1x1x32xf32>
    %128 = vector.shape_cast %127 : vector<1x1x32xf32> to vector<1x32xf32>
    %129 = vector.broadcast %128 : vector<1x32xf32> to vector<32x32xf32>
    %130 = arith.mulf %125, %129 : vector<32x32xf32>
    %131 = arith.index_cast %c1_i32 : i32 to index
    %c0_52 = arith.constant 0 : index
    %c0_53 = arith.constant 0 : index
    %132 = vector.load %arg10[%131, %c0_52, %c0_53] : memref<2x1x32xf32, #tpu.memory_space<vmem>>, vector<1x1x32xf32>
    %133 = vector.shape_cast %132 : vector<1x1x32xf32> to vector<1x32xf32>
    %134 = vector.broadcast %133 : vector<1x32xf32> to vector<32x32xf32>
    %135 = arith.addf %130, %134 : vector<32x32xf32>
    %cst_54 = arith.constant 0.000000e+00 : f32
    %136 = vector.broadcast %cst_54 : f32 to vector<32x32xf32>
    %137 = arith.maximumf %135, %136 : vector<32x32xf32>
    %138 = arith.addf %137, %73 : vector<32x32xf32>
    %c2_i32 = arith.constant 2 : i32
    %c0_55 = arith.constant 0 : index
    %c0_56 = arith.constant 0 : index
    %139 = vector.load %arg11[%c0_55, %c0_56] : memref<4x32xf32, #tpu.memory_space<vmem>>, vector<4x32xf32>
    %140 = arith.truncf %139 : vector<4x32xf32> to vector<4x32xbf16>
    %141 = arith.truncf %138 : vector<32x32xf32> to vector<32x32xbf16>
    %cst_57 = arith.constant dense<0.000000e+00> : vector<4x32xf32>
    %142 = tpu.matmul %140, %141, %cst_57 {dimension_numbers = #tpu.dot_dimension_numbers<[1], [0], [0], [1], [0, 0, 1, 1], [], []>} : vector<4x32xbf16>, vector<32x32xbf16>, vector<4x32xf32> -> vector<4x32xf32>
    %c0_58 = arith.constant 0 : index
    %c0_59 = arith.constant 0 : index
    %143 = vector.load %arg12[%c0_58, %c0_59] : memref<32x64xf32, #tpu.memory_space<vmem>>, vector<32x64xf32>
    %144 = arith.truncf %142 : vector<4x32xf32> to vector<4x32xbf16>
    %145 = arith.truncf %143 : vector<32x64xf32> to vector<32x64xbf16>
    %cst_60 = arith.constant dense<0.000000e+00> : vector<4x64xf32>
    %146 = tpu.matmul %144, %145, %cst_60 {dimension_numbers = #tpu.dot_dimension_numbers<[1], [0], [0], [1], [0, 0, 1, 1], [], []>} : vector<4x32xbf16>, vector<32x64xbf16>, vector<4x64xf32> -> vector<4x64xf32>
    %c0_61 = arith.constant 0 : index
    %c0_62 = arith.constant 0 : index
    %147 = vector.load %arg13[%c0_61, %c0_62] : memref<1x64xf32, #tpu.memory_space<vmem>>, vector<1x64xf32>
    %148 = vector.broadcast %147 : vector<1x64xf32> to vector<4x64xf32>
    %149 = arith.addf %146, %148 : vector<4x64xf32>
    %cst_63 = arith.constant 0.000000e+00 : f32
    %150 = vector.broadcast %cst_63 : f32 to vector<4x64xf32>
    %151 = arith.maximumf %149, %150 : vector<4x64xf32>
    %c0_64 = arith.constant 0 : index
    %c0_65 = arith.constant 0 : index
    %152 = vector.load %arg14[%c0_64, %c0_65] : memref<64x1xf32, #tpu.memory_space<vmem>>, vector<64x1xf32>
    %153 = arith.truncf %151 : vector<4x64xf32> to vector<4x64xbf16>
    %154 = arith.truncf %152 : vector<64x1xf32> to vector<64x1xbf16>
    %cst_66 = arith.constant dense<0.000000e+00> : vector<4x1xf32>
    %155 = tpu.matmul %153, %154, %cst_66 {dimension_numbers = #tpu.dot_dimension_numbers<[1], [0], [0], [1], [0, 0, 1, 1], [], []>} : vector<4x64xbf16>, vector<64x1xbf16>, vector<4x1xf32> -> vector<4x1xf32>
    %c0_67 = arith.constant 0 : index
    %c0_68 = arith.constant 0 : index
    %156 = vector.load %arg15[%c0_67, %c0_68] : memref<1x1xf32, #tpu.memory_space<vmem>>, vector<1x1xf32>
    %157 = vector.broadcast %156 : vector<1x1xf32> to vector<4x1xf32>
    %158 = arith.addf %155, %157 : vector<4x1xf32>
    %c0_69 = arith.constant 0 : index
    %c0_70 = arith.constant 0 : index
    %159 = vector.load %arg16[%c0_69, %c0_70] : memref<4x1xf32, #tpu.memory_space<vmem>>, vector<4x1xf32>
    tpu.vector_store %arg16[%c0_69, %c0_70], %158 {strides = array<i32>} : memref<4x1xf32, #tpu.memory_space<vmem>>, vector<4x1xf32>,
    return
  }
}

</mosaic_0001>

<llo_original>
// kernel: gnn_bench_forward.2
$region0: #{gnn_bench_forward.2}
  #allocation0 [shape = 'u32[]', space=smem, size = 0x4, offset = 0x4, fixed_abs, tag = 'smem constant byte address 0x4 - core index']
  #allocation1 [shape = 'u32[72,128]{1,0:T(1,128)}', space=vmem, size = 0x9000, scoped, tag = 'internal scratch']
  #allocation2 [shape = 'f32[32,1]{1,0:T(8,128)}', space=vmem, size = 0x4000, scoped, tag = 'scratch operand']
  #allocation3 [shape = 'f32[1,1]{1,0:T(1,128)S(1)}', space=vmem, size = 0x200, scoped, tag = 'scoped memory for gnn_bench_forward.2']
  %s0 = inlined_call_operand.vmem [shape: f32[32,1], index: 0, kind: input, shape index: {}]
  %s1 = inlined_call_operand.vmem [shape: f32[1,32], index: 1, kind: input, shape index: {}]
  %s2 = inlined_call_operand.vmem [shape: f32[64,1], index: 2, kind: input, shape index: {}]
  %s3 = inlined_call_operand.vmem [shape: bf16[32,128], index: 3, kind: input, shape index: {}]
  %s4 = inlined_call_operand.vmem [shape: f32[20,3], index: 4, kind: input, shape index: {}]
  %s5 = inlined_call_operand.vmem [shape: f32[3,20], index: 5, kind: input, shape index: {}]
  %s6 = inlined_call_operand.<no memory space> [shape: f32[1,1], index: 6, kind: input, shape index: {}]
  %s7 = inlined_call_operand.vmem [shape: f32[60,1], index: 7, kind: input, shape index: {}]
  %s8 = inlined_call_operand.vmem [shape: f32[60,1], index: 8, kind: input, shape index: {}]
  %s9 = inlined_call_operand.vmem [shape: f32[3,60], index: 9, kind: input, shape index: {}]
  %s10 = inlined_call_operand.vmem [shape: f32[3,1], index: 10, kind: input, shape index: {}]
  %s11 = inlined_call_operand.vmem [shape: f32[64,64], index: 11, kind: input, shape index: {}]
  %s12 = inlined_call_operand.vmem [shape: f32[1,64], index: 12, kind: input, shape index: {}]
  %s13 = inlined_call_operand.vmem [shape: f32[64,64], index: 13, kind: input, shape index: {}]
  %s14 = inlined_call_operand.vmem [shape: f32[1,64], index: 14, kind: input, shape index: {}]
  %s15 = inlined_call_operand.vmem [shape: f32[64,64], index: 15, kind: input, shape index: {}]
  %s16 = inlined_call_operand.vmem [shape: f32[1,64], index: 16, kind: input, shape index: {}]
  %s17 = inlined_call_operand.vmem [shape: f32[1,32], index: 17, kind: output, shape index: {0}]
  %s18 = inlined_call_operand.hbm [shape: f32[1,1], index: 18, kind: output, shape index: {1}]
  %19 = xla_tuple %s17, %s18
  %s20 = sld [smem:[#allocation0]]
  $region86: #{gnn_bench_forward.2} parent=0
    _
  %s22 = ssub.s32 1, %s20
  %s23 = scalar_select 0, %s22, %s20
  %v24 = vstv %s6
  %25 = vst [vmem:[#allocation3] sm:$0x1] %v24
  $region1: #{gnn_bench_forward.2} parent=0
    #allocation4 [shape = 'u8[512]{0}', space=vmem, size = 0x400, scoped, tag = 'output window, operand 1, single buffered']
    #allocation5 [shape = 's32[1]{0}', space=sflag, size = 0x4, scoped, tag = 'scoped memory for gnn_bench_forward.2']
    %26 = vsyncpa [#allocation5], 0
    // Predicated region
    $region2: #{gnn_bench_forward.2} parent=1 // pred_check
      _
    $region3: #{gnn_bench_forward.2} parent=1 // pred_check_branch
      %28 = sbr.rel (0) target = $region5
    $region4: #{gnn_bench_forward.2} parent=1 // pred_region
      _
    $region5: #{gnn_bench_forward.2} parent=1 // pred_fallthru
      _
    // Predicated region
    $region6: #{gnn_bench_forward.2} parent=1 // pred_check
      _
    $region7: #{gnn_bench_forward.2} parent=1 // pred_check_branch
      %30 = sbr.rel (0) target = $region9
    $region8: #{gnn_bench_forward.2} parent=1 // pred_region
      _
    $region9: #{gnn_bench_forward.2} parent=1 // pred_fallthru
      _
    // Predicated region
    $region10: #{gnn_bench_forward.2} parent=1 // pred_check
      _
    $region11: #{gnn_bench_forward.2} parent=1 // pred_check_branch
      %32 = sbr.rel (0) target = $region13
    $region12: #{gnn_bench_forward.2} parent=1 // pred_region
      _
    $region13: #{gnn_bench_forward.2} parent=1 // pred_fallthru
      _
    // Predicated region
    $region14: #{gnn_bench_forward.2} parent=1 // pred_check
      _
    $region15: #{gnn_bench_forward.2} parent=1 // pred_check_branch
      %34 = sbr.rel (0) target = $region17
    $region16: #{gnn_bench_forward.2} parent=1 // pred_region
      _
    $region17: #{gnn_bench_forward.2} parent=1 // pred_fallthru
      _
    // Predicated region
    $region18: #{gnn_bench_forward.2} parent=1 // pred_check
      _
    $region19: #{gnn_bench_forward.2} parent=1 // pred_check_branch
      %36 = sbr.rel (0) target = $region21
    $region20: #{gnn_bench_forward.2} parent=1 // pred_region
      _
    $region21: #{gnn_bench_forward.2} parent=1 // pred_fallthru
      _
    // Predicated region
    $region22: #{gnn_bench_forward.2} parent=1 // pred_check
      _
    $region23: #{gnn_bench_forward.2} parent=1 // pred_check_branch
      %38 = sbr.rel (0) target = $region25
    $region24: #{gnn_bench_forward.2} parent=1 // pred_region
      _
    $region25: #{gnn_bench_forward.2} parent=1 // pred_fallthru
      _
    // Predicated region
    $region26: #{gnn_bench_forward.2} parent=1 // pred_check
      _
    $region27: #{gnn_bench_forward.2} parent=1 // pred_check_branch
      %40 = sbr.rel (0) target = $region29
    $region28: #{gnn_bench_forward.2} parent=1 // pred_region
      _
    $region29: #{gnn_bench_forward.2} parent=1 // pred_fallthru
      _
    // Predicated region
    $region30: #{gnn_bench_forward.2} parent=1 // pred_check
      _
    $region31: #{gnn_bench_forward.2} parent=1 // pred_check_branch
      %42 = sbr.rel (0) target = $region33
    $region32: #{gnn_bench_forward.2} parent=1 // pred_region
      _
    $region33: #{gnn_bench_forward.2} parent=1 // pred_fallthru
      _
    // Predicated region
    $region34: #{gnn_bench_forward.2} parent=1 // pred_check
      _
    $region35: #{gnn_bench_forward.2} parent=1 // pred_check_branch
      %44 = sbr.rel (0) target = $region37
    $region36: #{gnn_bench_forward.2} parent=1 // pred_region
      _
    $region37: #{gnn_bench_forward.2} parent=1 // pred_fallthru
      _
    // Predicated region
    $region38: #{gnn_bench_forward.2} parent=1 // pred_check
      _
    $region39: #{gnn_bench_forward.2} parent=1 // pred_check_branch
      %46 = sbr.rel (0) target = $region41
    $region40: #{gnn_bench_forward.2} parent=1 // pred_region
      _
    $region41: #{gnn_bench_forward.2} parent=1 // pred_fallthru
      _
    // Predicated region
    $region42: #{gnn_bench_forward.2} parent=1 // pred_check
      _
    $region43: #{gnn_bench_forward.2} parent=1 // pred_check_branch
      %48 = sbr.rel (0) target = $region45
    $region44: #{gnn_bench_forward.2} parent=1 // pred_region
      _
    $region45: #{gnn_bench_forward.2} parent=1 // pred_fallthru
      _
    // Predicated region
    $region46: #{gnn_bench_forward.2} parent=1 // pred_check
      _
    $region47: #{gnn_bench_forward.2} parent=1 // pred_check_branch
      %50 = sbr.rel (0) target = $region49
    $region48: #{gnn_bench_forward.2} parent=1 // pred_region
      _
    $region49: #{gnn_bench_forward.2} parent=1 // pred_fallthru
      _
    // Predicated region
    $region50: #{gnn_bench_forward.2} parent=1 // pred_check
      _
    $region51: #{gnn_bench_forward.2} parent=1 // pred_check_branch
      %52 = sbr.rel (0) target = $region53
    $region52: #{gnn_bench_forward.2} parent=1 // pred_region
      _
    $region53: #{gnn_bench_forward.2} parent=1 // pred_fallthru
      _
    // Predicated region
    $region54: #{gnn_bench_forward.2} parent=1 // pred_check
      _
    $region55: #{gnn_bench_forward.2} parent=1 // pred_check_branch
      %54 = sbr.rel (0) target = $region57
    $region56: #{gnn_bench_forward.2} parent=1 // pred_region
      _
    $region57: #{gnn_bench_forward.2} parent=1 // pred_fallthru
      _
    // Predicated region
    $region58: #{gnn_bench_forward.2} parent=1 // pred_check
      _
    $region59: #{gnn_bench_forward.2} parent=1 // pred_check_branch
      %56 = sbr.rel (0) target = $region61
    $region60: #{gnn_bench_forward.2} parent=1 // pred_region
      _
    $region61: #{gnn_bench_forward.2} parent=1 // pred_fallthru
      _
    // Predicated region
    $region62: #{gnn_bench_forward.2} parent=1 // pred_check
      _
    $region63: #{gnn_bench_forward.2} parent=1 // pred_check_branch
      %58 = sbr.rel (0) target = $region65
    $region64: #{gnn_bench_forward.2} parent=1 // pred_region
      _
    $region65: #{gnn_bench_forward.2} parent=1 // pred_fallthru
      _
    // Predicated region
    $region66: #{gnn_bench_forward.2} parent=1 // pred_check
      _
    $region67: #{gnn_bench_forward.2} parent=1 // pred_check_branch
      %60 = sbr.rel (0) target = $region69
    $region68: #{gnn_bench_forward.2} parent=1 // pred_region
      _
    $region69: #{gnn_bench_forward.2} parent=1 // pred_fallthru
      _
    %v62 = vld [vmem:[%s0] sm:$0xff]
    %v63 = vld [vmem:[%s0 + $0x8] sm:$0xff]
    %v64 = vld [vmem:[%s0 + $0x10] sm:$0xff]
    %v65 = vld [vmem:[%s0 + $0x18] sm:$0xff]
    %v66 = vld [vmem:[%s1] sm:$0x1]
    %v67 = vld [vmem:[#allocation3] sm:$0x1]
    %v68 = vld [vmem:[%s5] sm:$0x1]
    %v69 = vld [vmem:[%s5 + $0x1] sm:$0x1]
    %v70 = vld [vmem:[%s5 + $0x2] sm:$0x1]
    %72 = vset.pattern.permute.xlu0 0
    %73 = vperm.xlu0 %72, %v62
    %v74 = vpop.permute.xlu0 %73
    %77 = vset.pattern.permute.xlu0 0
    %78 = vperm.xlu0 %77, %v63
    %v79 = vpop.permute.xlu0 %78
    %82 = vset.pattern.permute.xlu0 0
    %83 = vperm.xlu0 %82, %v64
    %v84 = vpop.permute.xlu0 %83
    %87 = vset.pattern.permute.xlu0 0
    %88 = vperm.xlu0 %87, %v65
    %v89 = vpop.permute.xlu0 %88
    %v91 = vperm.slane %v68, 0
    %v92 = vmul.f32 %v74, %v91
    %v93 = vmul.f32 %v79, %v91
    %v94 = vmul.f32 %v84, %v91
    %v95 = vmul.f32 %v89, %v91
    %v96 = vperm.slane %v69, 0
    %v97 = vadd.f32 %v92, %v96
    %v98 = vadd.f32 %v93, %v96
    %v99 = vadd.f32 %v94, %v96
    %v100 = vadd.f32 %v95, %v96
    %v101 = vmax.f32 %v97, 0.0
    %v102 = vmax.f32 %v98, 0.0
    %v103 = vmax.f32 %v99, 0.0
    %v104 = vmax.f32 %v100, 0.0
    %v105 = vperm.slane %v70, 0
    %v106 = vmul.f32 %v101, %v105
    %v107 = vmul.f32 %v102, %v105
    %v108 = vmul.f32 %v103, %v105
    %v109 = vmul.f32 %v104, %v105
    %vm110 = vcmask 162816
    %v111 = vsel %vm110, %v106, 0.0
    %112 = vadd.xlane.f32.xlu0 %v111
    %v113 = vpop.xlane.xlu0 %112
    %v114 = vsel %vm110, %v107, 0.0
    %115 = vadd.xlane.f32.xlu0 %v114
    %v116 = vpop.xlane.xlu0 %115
    %v117 = vsel %vm110, %v108, 0.0
    %118 = vadd.xlane.f32.xlu0 %v117
    %v119 = vpop.xlane.xlu0 %118
    %v120 = vsel %vm110, %v109, 0.0
    %121 = vadd.xlane.f32.xlu0 %v120
    %v122 = vpop.xlane.xlu0 %121
    %v124 = vperm.slane %v67, 0
    %v126 = vadd.f32 %v113, %v124
    %v127 = vadd.f32 %v116, %v124
    %v128 = vadd.f32 %v119, %v124
    %v129 = vadd.f32 %v122, %v124
    %v130 = vxor.u32 %v126, 2147483648
    %v131 = vxor.u32 %v127, 2147483648
    %v132 = vxor.u32 %v128, 2147483648
    %v133 = vxor.u32 %v129, 2147483648
    %v134 = vmul.f32 %v130, 1.442695
    %v135 = vpow.pop %v134
    %v136 = vmul.f32 %v131, 1.442695
    %v137 = vpow.pop %v136
    %v138 = vmul.f32 %v132, 1.442695
    %v139 = vpow.pop %v138
    %v140 = vmul.f32 %v133, 1.442695
    %v141 = vpow.pop %v140
    %v142 = vadd.f32 %v135, 1.0
    %v143 = vadd.f32 %v137, 1.0
    %v144 = vadd.f32 %v139, 1.0
    %v145 = vadd.f32 %v141, 1.0
    %v146 = vrcp.pop %v142
    %v147 = vmul.f32 %v142, %v146
    %v148 = vsub.f32 1.0, %v147
    %v149 = vmul.f32 %v146, %v148
    %v150 = vadd.f32 %v146, %v149
    %vm151 = vweird.f32 %v142
    %vm152 = vweird.f32 %v146
    %vm153 = vmor %vm151, %vm152
    %v154 = vsel %vm153, %v146, %v150
    %v155 = vand.u32 2147483647, %v142
    %vm156 = vcmp.eq.f32.partialorder %v155, 8.507059e+37
    %v157 = vand.u32 %v142, 2147483648
    %v158 = vor.u32 1.1754944e-38, %v157
    %v159 = vsel %vm156, %v158, %v154
    %v160 = vmul.f32 1.0, %v159
    %v161 = vrcp.pop %v143
    %v162 = vmul.f32 %v143, %v161
    %v163 = vsub.f32 1.0, %v162
    %v164 = vmul.f32 %v161, %v163
    %v165 = vadd.f32 %v161, %v164
    %vm166 = vweird.f32 %v143
    %vm167 = vweird.f32 %v161
    %vm168 = vmor %vm166, %vm167
    %v169 = vsel %vm168, %v161, %v165
    %v170 = vand.u32 2147483647, %v143
    %vm171 = vcmp.eq.f32.partialorder %v170, 8.507059e+37
    %v172 = vand.u32 %v143, 2147483648
    %v173 = vor.u32 1.1754944e-38, %v172
    %v174 = vsel %vm171, %v173, %v169
    %v175 = vmul.f32 1.0, %v174
    %v176 = vrcp.pop %v144
    %v177 = vmul.f32 %v144, %v176
    %v178 = vsub.f32 1.0, %v177
    %v179 = vmul.f32 %v176, %v178
    %v180 = vadd.f32 %v176, %v179
    %vm181 = vweird.f32 %v144
    %vm182 = vweird.f32 %v176
    %vm183 = vmor %vm181, %vm182
    %v184 = vsel %vm183, %v176, %v180
    %v185 = vand.u32 2147483647, %v144
    %vm186 = vcmp.eq.f32.partialorder %v185, 8.507059e+37
    %v187 = vand.u32 %v144, 2147483648
    %v188 = vor.u32 1.1754944e-38, %v187
    %v189 = vsel %vm186, %v188, %v184
    %v190 = vmul.f32 1.0, %v189
    %v191 = vrcp.pop %v145
    %v192 = vmul.f32 %v145, %v191
    %v193 = vsub.f32 1.0, %v192
    %v194 = vmul.f32 %v191, %v193
    %v195 = vadd.f32 %v191, %v194
    %vm196 = vweird.f32 %v145
    %vm197 = vweird.f32 %v191
    %vm198 = vmor %vm196, %vm197
    %v199 = vsel %vm198, %v191, %v195
    %v200 = vand.u32 2147483647, %v145
    %vm201 = vcmp.eq.f32.partialorder %v200, 8.507059e+37
    %v202 = vand.u32 %v145, 2147483648
    %v203 = vor.u32 1.1754944e-38, %v202
    %v204 = vsel %vm201, %v203, %v199
    %v205 = vmul.f32 1.0, %v204
    %vm206 = vcmask 7168
    %207 = vst.msk [vmem:[#allocation2] sm:$0xff] %vm206, %v160
    %208 = vst.msk [vmem:[#allocation2 + $0x8] sm:$0xff] %vm206, %v175
    %209 = vst.msk [vmem:[#allocation2 + $0x10] sm:$0xff] %vm206, %v190
    %210 = vst.msk [vmem:[#allocation2 + $0x18] sm:$0xff] %vm206, %v205
    %v211 = vld [vmem:[%s4] sm:$0xff]
    %v212 = vld [vmem:[%s4 + $0x8] sm:$0xff]
    %v213 = vld [vmem:[%s4 + $0x10] sm:$0xf]
    %215 = vset.pattern.permute.xlu0 0
    %216 = vperm.xlu0 %215, %v211
    %v217 = vpop.permute.xlu0 %216
    %220 = vset.pattern.permute.xlu0 0
    %221 = vperm.xlu0 %220, %v212
    %v222 = vpop.permute.xlu0 %221
    %225 = vset.pattern.permute.xlu0 0
    %226 = vperm.xlu0 %225, %v213
    %v227 = vpop.permute.xlu0 %226
    %v230 = vperm.slane %v66, 0
    %v232 = vmul.f32 %v217, %v230
    %v233 = vmul.f32 %v222, %v230
    %v234 = vmul.f32 %v227, %v230
    %235 = vset.pattern.permute.xlu0 1
    %236 = vperm.xlu0 %235, %v211
    %v237 = vpop.permute.xlu0 %236
    %239 = vset.pattern.permute.xlu0 1
    %240 = vperm.xlu0 %239, %v212
    %v241 = vpop.permute.xlu0 %240
    %243 = vset.pattern.permute.xlu0 1
    %244 = vperm.xlu0 %243, %v213
    %v245 = vpop.permute.xlu0 %244
    %v247 = vadd.f32 %v232, %v237
    %v248 = vadd.f32 %v233, %v241
    %v249 = vadd.f32 %v234, %v245
    %v250 = vmax.f32 %v247, 0.0
    %v251 = vmax.f32 %v248, 0.0
    %v252 = vmax.f32 %v249, 0.0
    %253 = vset.pattern.permute.xlu0 2
    %254 = vperm.xlu0 %253, %v211
    %v255 = vpop.permute.xlu0 %254
    %257 = vset.pattern.permute.xlu0 2
    %258 = vperm.xlu0 %257, %v212
    %v259 = vpop.permute.xlu0 %258
    %261 = vset.pattern.permute.xlu0 2
    %262 = vperm.xlu0 %261, %v213
    %v263 = vpop.permute.xlu0 %262
    %v265 = vmul.f32 %v255, %v250
    %v266 = vmul.f32 %v259, %v251
    %v267 = vmul.f32 %v263, %v252
    %vm268 = vcmask 261120
    %v269 = vsel %vm268, %v265, 0.0
    %v270 = vsel %vm268, %v266, 0.0
    %v271 = vadd.f32 %v269, %v270
    %vm272 = vcmask 257024
    %v273 = vsel %vm272, %v267, 0.0
    %v274 = vadd.f32 %v271, %v273
    %v275 = vrot.slane %v274, 4
    %v276 = vadd.f32 %v274, %v275
    %v277 = vrot.slane %v276, 2
    %v278 = vadd.f32 %v276, %v277
    %v279 = vrot.slane %v278, 1
    %v280 = vadd.f32 %v278, %v279
    %281 = vset.pattern.permute.xlu0 0
    %282 = vperm.xlu0 %281, %v67
    %v283 = vpop.permute.xlu0 %282
    %v285 = vperm.slane %v283, 0
    %v286 = vadd.f32 %v280, %v285
    %v287 = vxor.u32 %v286, 2147483648
    %v288 = vmul.f32 %v287, 1.442695
    %v289 = vpow.pop %v288
    %v290 = vadd.f32 %v289, 1.0
    %v291 = vrcp.pop %v290
    %v292 = vmul.f32 %v290, %v291
    %v293 = vsub.f32 1.0, %v292
    %v294 = vmul.f32 %v291, %v293
    %v295 = vadd.f32 %v291, %v294
    %vm296 = vweird.f32 %v290
    %vm297 = vweird.f32 %v291
    %vm298 = vmor %vm296, %vm297
    %v299 = vsel %vm298, %v291, %v295
    %v300 = vand.u32 2147483647, %v290
    %vm301 = vcmp.eq.f32.partialorder %v300, 8.507059e+37
    %v302 = vand.u32 %v290, 2147483648
    %v303 = vor.u32 1.1754944e-38, %v302
    %v304 = vsel %vm301, %v303, %v299
    %v305 = vmul.f32 1.0, %v304
    %vm306 = vcmask 253952
    %307 = vst.msk [vmem:[%s17] sm:$0x1] %vm306, %v305
    %v308 = vld [vmem:[%s7] sm:$0xff]
    %v309 = vld [vmem:[%s7 + $0x8] sm:$0xff]
    %v310 = vld [vmem:[%s7 + $0x10] sm:$0xff]
    %v311 = vld [vmem:[%s7 + $0x18] sm:$0xff]
    %v312 = vld [vmem:[%s7 + $0x20] sm:$0xff]
    %v313 = vld [vmem:[%s7 + $0x28] sm:$0xff]
    %v314 = vld [vmem:[%s7 + $0x30] sm:$0xff]
    %v315 = vld [vmem:[%s7 + $0x38] sm:$0xf]
    %317 = vset.pattern.permute.xlu0 0
    %318 = vperm.xlu0 %317, %v308
    %v319 = vpop.permute.xlu0 %318
    %322 = vset.pattern.permute.xlu0 0
    %323 = vperm.xlu0 %322, %v309
    %v324 = vpop.permute.xlu0 %323
    %327 = vset.pattern.permute.xlu0 0
    %328 = vperm.xlu0 %327, %v310
    %v329 = vpop.permute.xlu0 %328
    %332 = vset.pattern.permute.xlu0 0
    %333 = vperm.xlu0 %332, %v311
    %v334 = vpop.permute.xlu0 %333
    %337 = vset.pattern.permute.xlu0 0
    %338 = vperm.xlu0 %337, %v312
    %v339 = vpop.permute.xlu0 %338
    %342 = vset.pattern.permute.xlu0 0
    %343 = vperm.xlu0 %342, %v313
    %v344 = vpop.permute.xlu0 %343
    %347 = vset.pattern.permute.xlu0 0
    %348 = vperm.xlu0 %347, %v314
    %v349 = vpop.permute.xlu0 %348
    %352 = vset.pattern.permute.xlu0 0
    %353 = vperm.xlu0 %352, %v315
    %v354 = vpop.permute.xlu0 %353
    %v356 = vmul.f32 %v319, %v230
    %v357 = vmul.f32 %v324, %v230
    %v358 = vmul.f32 %v329, %v230
    %v359 = vmul.f32 %v334, %v230
    %v360 = vmul.f32 %v339, %v230
    %v361 = vmul.f32 %v344, %v230
    %v362 = vmul.f32 %v349, %v230
    %v363 = vmul.f32 %v354, %v230
    %v364 = vld [vmem:[%s8] sm:$0xff]
    %v365 = vld [vmem:[%s8 + $0x8] sm:$0xff]
    %v366 = vld [vmem:[%s8 + $0x10] sm:$0xff]
    %v367 = vld [vmem:[%s8 + $0x18] sm:$0xff]
    %v368 = vld [vmem:[%s8 + $0x20] sm:$0xff]
    %v369 = vld [vmem:[%s8 + $0x28] sm:$0xff]
    %v370 = vld [vmem:[%s8 + $0x30] sm:$0xff]
    %v371 = vld [vmem:[%s8 + $0x38] sm:$0xf]
    %373 = vset.pattern.permute.xlu0 0
    %374 = vperm.xlu0 %373, %v364
    %v375 = vpop.permute.xlu0 %374
    %378 = vset.pattern.permute.xlu0 0
    %379 = vperm.xlu0 %378, %v365
    %v380 = vpop.permute.xlu0 %379
    %383 = vset.pattern.permute.xlu0 0
    %384 = vperm.xlu0 %383, %v366
    %v385 = vpop.permute.xlu0 %384
    %388 = vset.pattern.permute.xlu0 0
    %389 = vperm.xlu0 %388, %v367
    %v390 = vpop.permute.xlu0 %389
    %393 = vset.pattern.permute.xlu0 0
    %394 = vperm.xlu0 %393, %v368
    %v395 = vpop.permute.xlu0 %394
    %398 = vset.pattern.permute.xlu0 0
    %399 = vperm.xlu0 %398, %v369
    %v400 = vpop.permute.xlu0 %399
    %403 = vset.pattern.permute.xlu0 0
    %404 = vperm.xlu0 %403, %v370
    %v405 = vpop.permute.xlu0 %404
    %408 = vset.pattern.permute.xlu0 0
    %409 = vperm.xlu0 %408, %v371
    %v410 = vpop.permute.xlu0 %409
    %v412 = vadd.f32 %v356, %v375
    %v413 = vadd.f32 %v357, %v380
    %v414 = vadd.f32 %v358, %v385
    %v415 = vadd.f32 %v359, %v390
    %v416 = vadd.f32 %v360, %v395
    %v417 = vadd.f32 %v361, %v400
    %v418 = vadd.f32 %v362, %v405
    %v419 = vadd.f32 %v363, %v410
    %v420 = vmax.f32 %v412, 0.0
    %v421 = vmax.f32 %v413, 0.0
    %v422 = vmax.f32 %v414, 0.0
    %v423 = vmax.f32 %v415, 0.0
    %v424 = vmax.f32 %v416, 0.0
    %v425 = vmax.f32 %v417, 0.0
    %v426 = vmax.f32 %v418, 0.0
    %v427 = vmax.f32 %v419, 0.0
    %v428 = vld [vmem:[%s9] sm:$0x7]
    %v429 = vld [vmem:[%s10] sm:$0x7]
    %431 = vset.pattern.permute.xlu0 0
    %432 = vperm.xlu0 %431, %v429
    %v433 = vpop.permute.xlu0 %432
    %vm435 = vcmask 490496
    %v437 = vsel %vm435, %v428, 0
    %vm439 = vcmask 1043456
    %v441 = vsel %vm439, %v427, 0
    %443 = vmatpush.msra.mxu0 0.0
    %444 = vmatpush.msra.mxu0 0.0
    %445 = vmatpush.msra.mxu0 0.0
    %446 = vmatpush.msra.mxu0 0.0
    %447 = vmatpush.msra.mxu0 0.0
    %448 = vmatpush.msra.mxu0 0.0
    %449 = vmatpush.msra.mxu0 0.0
    %450 = vmatpush.msra.mxu0 0.0
    %451 = vmatpush.msra.mxu0 %v441
    %452 = vmatpush.msra.mxu0 %v426
    %453 = vmatpush.msra.mxu0 %v425
    %454 = vmatpush.msra.mxu0 %v424
    %455 = vmatpush.msra.mxu0 %v423
    %456 = vmatpush.msra.mxu0 %v422
    %457 = vmatpush.msra.mxu0 %v421
    %458 = vmatpush.msra.mxu0 %v420
    %459 = vmatmul.f32.gmra.mxu0 %v437
    %v460 = vpop.f32.mrf.mxu0
    %v461 = vadd.f32 %v433, %v460
    %462 = vdwg.mxu0
    %v463 = vxor.u32 %v461, 2147483648
    %v464 = vmul.f32 %v463, 1.442695
    %v465 = vpow.pop %v464
    %v466 = vadd.f32 %v465, 1.0
    %v467 = vrcp.pop %v466
    %v468 = vmul.f32 %v466, %v467
    %v469 = vsub.f32 1.0, %v468
    %v470 = vmul.f32 %v467, %v469
    %v471 = vadd.f32 %v467, %v470
    %vm472 = vweird.f32 %v466
    %vm473 = vweird.f32 %v467
    %vm474 = vmor %vm472, %vm473
    %v475 = vsel %vm474, %v467, %v471
    %v476 = vand.u32 2147483647, %v466
    %vm477 = vcmp.eq.f32.partialorder %v476, 8.507059e+37
    %v478 = vand.u32 %v466, 2147483648
    %v479 = vor.u32 1.1754944e-38, %v478
    %v480 = vsel %vm477, %v479, %v475
    %v481 = vmul.f32 1.0, %v480
    %v482 = vld [vmem:[%s2] sm:$0xff]
    %v483 = vld [vmem:[%s2 + $0x8] sm:$0xff]
    %v484 = vld [vmem:[%s2 + $0x10] sm:$0xff]
    %v485 = vld [vmem:[%s2 + $0x18] sm:$0xff]
    %v486 = vld [vmem:[%s2 + $0x20] sm:$0xff]
    %v487 = vld [vmem:[%s2 + $0x28] sm:$0xff]
    %v488 = vld [vmem:[%s2 + $0x30] sm:$0xff]
    %v489 = vld [vmem:[%s2 + $0x38] sm:$0xff]
    %v490 = vld [vmem:[%s11] sm:$0xff]
    %v491 = vld [vmem:[%s11 + $0x8] sm:$0xff]
    %v492 = vld [vmem:[%s11 + $0x10] sm:$0xff]
    %v493 = vld [vmem:[%s11 + $0x18] sm:$0xff]
    %v494 = vld [vmem:[%s11 + $0x20] sm:$0xff]
    %v495 = vld [vmem:[%s11 + $0x28] sm:$0xff]
    %v496 = vld [vmem:[%s11 + $0x30] sm:$0xff]
    %v497 = vld [vmem:[%s11 + $0x38] sm:$0xff]
    %499 = vset.pattern.permute.xlu0 0
    %500 = vperm.xlu0 %499, %v482
    %v501 = vpop.permute.xlu0 %500
    %504 = vset.pattern.permute.xlu0 0
    %505 = vperm.xlu0 %504, %v483
    %v506 = vpop.permute.xlu0 %505
    %509 = vset.pattern.permute.xlu0 0
    %510 = vperm.xlu0 %509, %v484
    %v511 = vpop.permute.xlu0 %510
    %514 = vset.pattern.permute.xlu0 0
    %515 = vperm.xlu0 %514, %v485
    %v516 = vpop.permute.xlu0 %515
    %519 = vset.pattern.permute.xlu0 0
    %520 = vperm.xlu0 %519, %v486
    %v521 = vpop.permute.xlu0 %520
    %524 = vset.pattern.permute.xlu0 0
    %525 = vperm.xlu0 %524, %v487
    %v526 = vpop.permute.xlu0 %525
    %529 = vset.pattern.permute.xlu0 0
    %530 = vperm.xlu0 %529, %v488
    %v531 = vpop.permute.xlu0 %530
    %534 = vset.pattern.permute.xlu0 0
    %535 = vperm.xlu0 %534, %v489
    %v536 = vpop.permute.xlu0 %535
    %v538 = vmul.f32 %v501, %v490
    %v539 = vmul.f32 %v506, %v491
    %v540 = vmul.f32 %v511, %v492
    %v541 = vmul.f32 %v516, %v493
    %v542 = vmul.f32 %v521, %v494
    %v543 = vmul.f32 %v526, %v495
    %v544 = vmul.f32 %v531, %v496
    %v545 = vmul.f32 %v536, %v497
    %vm546 = vcmask 523264
    %v547 = vsel %vm546, %v538, 0.0
    %v548 = vsel %vm546, %v539, 0.0
    %v549 = vadd.f32 %v547, %v548
    %v550 = vsel %vm546, %v540, 0.0
    %v551 = vadd.f32 %v549, %v550
    %v552 = vsel %vm546, %v541, 0.0
    %v553 = vadd.f32 %v551, %v552
    %v554 = vsel %vm546, %v542, 0.0
    %v555 = vadd.f32 %v553, %v554
    %v556 = vsel %vm546, %v543, 0.0
    %v557 = vadd.f32 %v555, %v556
    %v558 = vsel %vm546, %v544, 0.0
    %v559 = vadd.f32 %v557, %v558
    %v560 = vsel %vm546, %v545, 0.0
    %v561 = vadd.f32 %v559, %v560
    %v562 = vrot.slane %v561, 4
    %v563 = vadd.f32 %v561, %v562
    %v564 = vrot.slane %v563, 2
    %v565 = vadd.f32 %v563, %v564
    %v566 = vrot.slane %v565, 1
    %v567 = vadd.f32 %v565, %v566
    %v568 = vld [vmem:[%s12] sm:$0x1]
    %v569 = vadd.f32 %v567, %v568
    %v570 = vmax.f32 %v569, 0.0
    %v571 = vld [vmem:[%s13] sm:$0xff]
    %v572 = vld [vmem:[%s13 + $0x8] sm:$0xff]
    %v573 = vld [vmem:[%s13 + $0x10] sm:$0xff]
    %v574 = vld [vmem:[%s13 + $0x18] sm:$0xff]
    %v575 = vld [vmem:[%s13 + $0x20] sm:$0xff]
    %v576 = vld [vmem:[%s13 + $0x28] sm:$0xff]
    %v577 = vld [vmem:[%s13 + $0x30] sm:$0xff]
    %v578 = vld [vmem:[%s13 + $0x38] sm:$0xff]
    %v579 = vld [vmem:[%s14] sm:$0x1]
    %v581 = vsel %vm546, %v570, 0
    %583 = vmatpush.msra.mxu0 0.0
    %584 = vmatpush.msra.mxu0 0.0
    %585 = vmatpush.msra.mxu0 0.0
    %586 = vmatpush.msra.mxu0 0.0
    %587 = vmatpush.msra.mxu0 0.0
    %588 = vmatpush.msra.mxu0 0.0
    %589 = vmatpush.msra.mxu0 0.0
    %590 = vmatpush.msra.mxu0 0.0
    %591 = vmatpush.msra.mxu0 %v578
    %592 = vmatpush.msra.mxu0 %v577
    %593 = vmatpush.msra.mxu0 %v576
    %594 = vmatpush.msra.mxu0 %v575
    %595 = vmatpush.msra.mxu0 %v574
    %596 = vmatpush.msra.mxu0 %v573
    %597 = vmatpush.msra.mxu0 %v572
    %598 = vmatpush.msra.mxu0 %v571
    %599 = vmatmul.f32.gmra.mxu0 %v581
    %v600 = vpop.f32.mrf.mxu0
    %v601 = vadd.f32 %v579, %v600
    %602 = vdwg.mxu0
    %v603 = vmax.f32 %v601, 0.0
    %v604 = vld [vmem:[%s15] sm:$0xff]
    %v605 = vld [vmem:[%s15 + $0x8] sm:$0xff]
    %v606 = vld [vmem:[%s15 + $0x10] sm:$0xff]
    %v607 = vld [vmem:[%s15 + $0x18] sm:$0xff]
    %v608 = vld [vmem:[%s15 + $0x20] sm:$0xff]
    %v609 = vld [vmem:[%s15 + $0x28] sm:$0xff]
    %v610 = vld [vmem:[%s15 + $0x30] sm:$0xff]
    %v611 = vld [vmem:[%s15 + $0x38] sm:$0xff]
    %v612 = vld [vmem:[%s16] sm:$0x1]
    %v614 = vsel %vm546, %v603, 0
    %616 = vmatpush.msra.mxu0 0.0
    %617 = vmatpush.msra.mxu0 0.0
    %618 = vmatpush.msra.mxu0 0.0
    %619 = vmatpush.msra.mxu0 0.0
    %620 = vmatpush.msra.mxu0 0.0
    %621 = vmatpush.msra.mxu0 0.0
    %622 = vmatpush.msra.mxu0 0.0
    %623 = vmatpush.msra.mxu0 0.0
    %624 = vmatpush.msra.mxu0 %v611
    %625 = vmatpush.msra.mxu0 %v610
    %626 = vmatpush.msra.mxu0 %v609
    %627 = vmatpush.msra.mxu0 %v608
    %628 = vmatpush.msra.mxu0 %v607
    %629 = vmatpush.msra.mxu0 %v606
    %630 = vmatpush.msra.mxu0 %v605
    %631 = vmatpush.msra.mxu0 %v604
    %632 = vmatmul.f32.gmra.mxu0 %v614
    %v633 = vpop.f32.mrf.mxu0
    %v634 = vadd.f32 %v612, %v633
    %635 = vdwg.mxu0
    %v636 = vxor.u32 %v634, 2147483648
    %v637 = vmul.f32 %v636, 1.442695
    %v638 = vpow.pop %v637
    %v639 = vadd.f32 %v638, 1.0
    %v640 = vrcp.pop %v639
    %v641 = vmul.f32 %v639, %v640
    %v642 = vsub.f32 1.0, %v641
    %v643 = vmul.f32 %v640, %v642
    %v644 = vadd.f32 %v640, %v643
    %vm645 = vweird.f32 %v639
    %vm646 = vweird.f32 %v640
    %vm647 = vmor %vm645, %vm646
    %v648 = vsel %vm647, %v640, %v644
    %v649 = vand.u32 2147483647, %v639
    %vm650 = vcmp.eq.f32.partialorder %v649, 8.507059e+37
    %v651 = vand.u32 %v639, 2147483648
    %v652 = vor.u32 1.1754944e-38, %v651
    %v653 = vsel %vm650, %v652, %v648
    %v654 = vmul.f32 1.0, %v653
    %v655 = vld [vmem:[%s3] sm:$0xf]
    %v656 = vld [vmem:[%s3 + $0x4] sm:$0xf]
    %v657 = vld [vmem:[%s3 + $0x8] sm:$0xf]
    %v658 = vld [vmem:[%s3 + $0xc] sm:$0xf]
    %v659 = vpack.c.bf16 %v481, %v481
    %v664 = vunpack.c.l.b16 %v655
    %v665 = vunpack.c.l.b16 %v656
    %v666 = vunpack.c.l.b16 %v657
    %v667 = vunpack.c.l.b16 %v658
    %v668 = vpack.c.b16 %v665, %v664
    %v669 = vpack.c.b16 %v667, %v666
    %v673 = vsel %vm268, %v659, 0
    %675 = vmatpush.bf16.msra.mxu0 0
    %676 = vmatpush.bf16.msra.mxu0 0
    %677 = vmatpush.bf16.msra.mxu0 0
    %678 = vmatpush.bf16.msra.mxu0 0
    %679 = vmatpush.bf16.msra.mxu0 0
    %680 = vmatpush.bf16.msra.mxu0 0
    %681 = vmatpush.bf16.msra.mxu0 %v669
    %682 = vmatpush.bf16.msra.mxu0 %v668
    %683 = vmatmul.bf16.gmra.mxu0 %v673
    %v684 = vpop.f32.mrf.mxu0
    %v685 = vadd.f32 0.0, %v684
    %v686 = vpop.f32.mrf.mxu0
    %687 = vdwg.mxu0
    %689 = vrot.lane.b32.xlu0 %v685, 64
    %v690 = vpop.permute.xlu0 %689
    %v692 = vsub.f32 %v685, %v690
    %v693 = vperm.slane %v654, 0
    %695 = vrot.lane.b32.xlu0 %v692, 64
    %v696 = vpop.permute.xlu0 %695
    %v698 = vmul.f32 %v693, %v696
    %v699 = vpack.c.bf16 %v698, %v698
    %v701 = vsel %vm546, %v699, 0
    %v704 = vsel %vm546, %v668, 0
    %v707 = vsel %vm546, %v669, 0
    %709 = vmatpush.bf16.xpose.msra.mxu0 0
    %710 = vmatpush.bf16.xpose.msra.mxu0 0
    %711 = vmatpush.bf16.xpose.msra.mxu0 0
    %712 = vmatpush.bf16.xpose.msra.mxu0 0
    %713 = vmatpush.bf16.xpose.msra.mxu0 0
    %714 = vmatpush.bf16.xpose.msra.mxu0 0
    %715 = vmatpush.bf16.xpose.msra.mxu0 %v707
    %716 = vmatpush.bf16.xpose.msra.mxu0 %v704
    %717 = vmatmul.bf16.gmra.mxu0 %v701
    %v718 = vpop.f32.mrf.mxu0
    %v719 = vadd.f32 0.0, %v718
    %v720 = vpop.f32.mrf.mxu0
    %721 = vdwg.mxu0
    %v722 = vmul.f32 %v698, %v696
    %v723 = vpack.c.bf16 %v722, %v722
    %v725 = vsel %vm546, %v723, 0
    %727 = vmatpush.bf16.xpose.msra.mxu0 0
    %728 = vmatpush.bf16.xpose.msra.mxu0 0
    %729 = vmatpush.bf16.xpose.msra.mxu0 0
    %730 = vmatpush.bf16.xpose.msra.mxu0 0
    %731 = vmatpush.bf16.xpose.msra.mxu0 0
    %732 = vmatpush.bf16.xpose.msra.mxu0 0
    %733 = vmatpush.bf16.xpose.msra.mxu0 %v707
    %734 = vmatpush.bf16.xpose.msra.mxu0 %v704
    %735 = vmatmul.bf16.gmra.mxu0 %v725
    %v736 = vpop.f32.mrf.mxu0
    %v737 = vadd.f32 0.0, %v736
    %v738 = vpop.f32.mrf.mxu0
    %739 = vdwg.mxu0
    %v740 = vmul.f32 %v737, 0.5
    %v741 = vpack.c.bf16 %v740, %v740
    %v743 = vsel %vm268, %v741, 0
    %745 = vmatpush.bf16.msra.mxu0 0
    %746 = vmatpush.bf16.msra.mxu0 0
    %747 = vmatpush.bf16.msra.mxu0 0
    %748 = vmatpush.bf16.msra.mxu0 0
    %749 = vmatpush.bf16.msra.mxu0 0
    %750 = vmatpush.bf16.msra.mxu0 0
    %751 = vmatpush.bf16.msra.mxu0 %v669
    %752 = vmatpush.bf16.msra.mxu0 %v668
    %753 = vmatmul.bf16.gmra.mxu0 %v743
    %v754 = vpop.f32.mrf.mxu0
    %v755 = vadd.f32 0.0, %v754
    %v756 = vpop.f32.mrf.mxu0
    %757 = vdwg.mxu0
    %v758 = vpack.c.bf16 %v719, %v719
    %v760 = vsel %vm268, %v758, 0
    %762 = vmatpush.bf16.msra.mxu0 0
    %763 = vmatpush.bf16.msra.mxu0 0
    %764 = vmatpush.bf16.msra.mxu0 0
    %765 = vmatpush.bf16.msra.mxu0 0
    %766 = vmatpush.bf16.msra.mxu0 0
    %767 = vmatpush.bf16.msra.mxu0 0
    %768 = vmatpush.bf16.msra.mxu0 %v669
    %769 = vmatpush.bf16.msra.mxu0 %v668
    %770 = vmatmul.bf16.gmra.mxu0 %v760
    %v771 = vpop.f32.mrf.mxu0
    %v772 = vadd.f32 0.0, %v771
    %v773 = vpop.f32.mrf.mxu0
    %774 = vdwg.mxu0
    %776 = vrot.lane.b32.xlu0 %v755, 64
    %v777 = vpop.permute.xlu0 %776
    %v779 = vsub.f32 %v755, %v777
    %781 = vrot.lane.b32.xlu0 %v779, 64
    %v782 = vpop.permute.xlu0 %781
    %v784 = vmul.f32 %v693, %v782
    %v785 = vpack.c.bf16 %v784, %v784
    %v787 = vsel %vm546, %v785, 0
    %789 = vmatpush.bf16.xpose.msra.mxu0 0
    %790 = vmatpush.bf16.xpose.msra.mxu0 0
    %791 = vmatpush.bf16.xpose.msra.mxu0 0
    %792 = vmatpush.bf16.xpose.msra.mxu0 0
    %793 = vmatpush.bf16.xpose.msra.mxu0 0
    %794 = vmatpush.bf16.xpose.msra.mxu0 0
    %795 = vmatpush.bf16.xpose.msra.mxu0 %v707
    %796 = vmatpush.bf16.xpose.msra.mxu0 %v704
    %797 = vmatmul.bf16.gmra.mxu0 %v787
    %v798 = vpop.f32.mrf.mxu0
    %v799 = vadd.f32 0.0, %v798
    %v800 = vpop.f32.mrf.mxu0
    %801 = vdwg.mxu0
    %803 = vrot.lane.b32.xlu0 %v772, 64
    %v804 = vpop.permute.xlu0 %803
    %v806 = vsub.f32 %v772, %v804
    %808 = vrot.lane.b32.xlu0 %v806, 64
    %v809 = vpop.permute.xlu0 %808
    %v811 = vmul.f32 %v698, %v809
    %v812 = vpack.c.bf16 %v811, %v811
    %v814 = vsel %vm546, %v812, 0
    %816 = vmatpush.bf16.xpose.msra.mxu0 0
    %817 = vmatpush.bf16.xpose.msra.mxu0 0
    %818 = vmatpush.bf16.xpose.msra.mxu0 0
    %819 = vmatpush.bf16.xpose.msra.mxu0 0
    %820 = vmatpush.bf16.xpose.msra.mxu0 0
    %821 = vmatpush.bf16.xpose.msra.mxu0 0
    %822 = vmatpush.bf16.xpose.msra.mxu0 %v707
    %823 = vmatpush.bf16.xpose.msra.mxu0 %v704
    %824 = vmatmul.bf16.gmra.mxu0 %v814
    %v825 = vpop.f32.mrf.mxu0
    %v826 = vadd.f32 0.0, %v825
    %v827 = vpop.f32.mrf.mxu0
    %828 = vdwg.mxu0
    %v829 = vmul.f32 %v826, 0.5
    %v830 = vmul.f32 %v799, 0.5
    %v831 = vsub.f32 %v830, %v829
    %v832 = vld [vmem:[#allocation2] sm:$0xff]
    %v833 = vld [vmem:[#allocation2 + $0x8] sm:$0xff]
    %v834 = vld [vmem:[#allocation2 + $0x10] sm:$0xff]
    %v835 = vld [vmem:[#allocation2 + $0x18] sm:$0xff]
    %837 = vset.pattern.permute.xlu0 0
    %838 = vperm.xlu0 %837, %v832
    %v839 = vpop.permute.xlu0 %838
    %842 = vset.pattern.permute.xlu0 0
    %843 = vperm.xlu0 %842, %v833
    %v844 = vpop.permute.xlu0 %843
    %847 = vset.pattern.permute.xlu0 0
    %848 = vperm.xlu0 %847, %v834
    %v849 = vpop.permute.xlu0 %848
    %852 = vset.pattern.permute.xlu0 0
    %853 = vperm.xlu0 %852, %v835
    %v854 = vpop.permute.xlu0 %853
    %v856 = vperm.slane %v740, 0
    %v857 = vmul.f32 %v839, %v856
    %v858 = vmul.f32 %v844, %v856
    %v859 = vmul.f32 %v849, %v856
    %v860 = vmul.f32 %v854, %v856
    %v861 = vperm.slane %v831, 0
    %v862 = vsub.f32 %v857, %v861
    %v863 = vsub.f32 %v858, %v861
    %v864 = vsub.f32 %v859, %v861
    %v865 = vsub.f32 %v860, %v861
    %v866 = vmax.f32 %v862, 0.0
    %v867 = vmax.f32 %v863, 0.0
    %v868 = vmax.f32 %v864, 0.0
    %v869 = vmax.f32 %v865, 0.0
    %v870 = vsel %vm268, %v866, 0.0
    %871 = vadd.xlane.f32.xlu0 %v870
    %v872 = vpop.xlane.xlu0 %871
    %v873 = vsel %vm268, %v867, 0.0
    %874 = vadd.xlane.f32.xlu0 %v873
    %v875 = vpop.xlane.xlu0 %874
    %v876 = vsel %vm268, %v868, 0.0
    %877 = vadd.xlane.f32.xlu0 %v876
    %v878 = vpop.xlane.xlu0 %877
    %v879 = vsel %vm268, %v869, 0.0
    %880 = vadd.xlane.f32.xlu0 %v879
    %v881 = vpop.xlane.xlu0 %880
    %v882 = vadd.f32 %v872, %v875
    %v883 = vadd.f32 %v882, %v878
    %v884 = vadd.f32 %v883, %v881
    %v885 = vrot.slane %v884, 4
    %v886 = vadd.f32 %v884, %v885
    %v887 = vrot.slane %v886, 2
    %v888 = vadd.f32 %v886, %v887
    %v889 = vrot.slane %v888, 1
    %v890 = vadd.f32 %v888, %v889
    %v891 = vadd.f32 %v890, 0.0
    %v892 = vperm.slane %v740, 1
    %v893 = vmul.f32 %v839, %v892
    %v894 = vmul.f32 %v844, %v892
    %v895 = vmul.f32 %v849, %v892
    %v896 = vmul.f32 %v854, %v892
    %v897 = vperm.slane %v831, 1
    %v898 = vsub.f32 %v893, %v897
    %v899 = vsub.f32 %v894, %v897
    %v900 = vsub.f32 %v895, %v897
    %v901 = vsub.f32 %v896, %v897
    %v902 = vmax.f32 %v898, 0.0
    %v903 = vmax.f32 %v899, 0.0
    %v904 = vmax.f32 %v900, 0.0
    %v905 = vmax.f32 %v901, 0.0
    %v906 = vsel %vm268, %v902, 0.0
    %907 = vadd.xlane.f32.xlu0 %v906
    %v908 = vpop.xlane.xlu0 %907
    %v909 = vsel %vm268, %v903, 0.0
    %910 = vadd.xlane.f32.xlu0 %v909
    %v911 = vpop.xlane.xlu0 %910
    %v912 = vsel %vm268, %v904, 0.0
    %913 = vadd.xlane.f32.xlu0 %v912
    %v914 = vpop.xlane.xlu0 %913
    %v915 = vsel %vm268, %v905, 0.0
    %916 = vadd.xlane.f32.xlu0 %v915
    %v917 = vpop.xlane.xlu0 %916
    %v918 = vadd.f32 %v908, %v911
    %v919 = vadd.f32 %v918, %v914
    %v920 = vadd.f32 %v919, %v917
    %v921 = vrot.slane %v920, 4
    %v922 = vadd.f32 %v920, %v921
    %v923 = vrot.slane %v922, 2
    %v924 = vadd.f32 %v922, %v923
    %v925 = vrot.slane %v924, 1
    %v926 = vadd.f32 %v924, %v925
    %v927 = vadd.f32 %v891, %v926
    %v928 = vperm.slane %v740, 2
    %v929 = vmul.f32 %v839, %v928
    %v930 = vmul.f32 %v844, %v928
    %v931 = vmul.f32 %v849, %v928
    %v932 = vmul.f32 %v854, %v928
    %v933 = vperm.slane %v831, 2
    %v934 = vsub.f32 %v929, %v933
    %v935 = vsub.f32 %v930, %v933
    %v936 = vsub.f32 %v931, %v933
    %v937 = vsub.f32 %v932, %v933
    %v938 = vmax.f32 %v934, 0.0
    %v939 = vmax.f32 %v935, 0.0
    %v940 = vmax.f32 %v936, 0.0
    %v941 = vmax.f32 %v937, 0.0
    %v942 = vsel %vm268, %v938, 0.0
    %943 = vadd.xlane.f32.xlu0 %v942
    %v944 = vpop.xlane.xlu0 %943
    %v945 = vsel %vm268, %v939, 0.0
    %946 = vadd.xlane.f32.xlu0 %v945
    %v947 = vpop.xlane.xlu0 %946
    %v948 = vsel %vm268, %v940, 0.0
    %949 = vadd.xlane.f32.xlu0 %v948
    %v950 = vpop.xlane.xlu0 %949
    %v951 = vsel %vm268, %v941, 0.0
    %952 = vadd.xlane.f32.xlu0 %v951
    %v953 = vpop.xlane.xlu0 %952
    %v954 = vadd.f32 %v944, %v947
    %v955 = vadd.f32 %v954, %v950
    %v956 = vadd.f32 %v955, %v953
    %v957 = vrot.slane %v956, 4
    %v958 = vadd.f32 %v956, %v957
    %v959 = vrot.slane %v958, 2
    %v960 = vadd.f32 %v958, %v959
    %v961 = vrot.slane %v960, 1
    %v962 = vadd.f32 %v960, %v961
    %v963 = vadd.f32 %v927, %v962
    %v964 = vsel %vm206, %v160, 0.0
    %v965 = vsel %vm206, %v175, 0.0
    %v966 = vadd.f32 %v964, %v965
    %v967 = vsel %vm206, %v190, 0.0
    %v968 = vadd.f32 %v966, %v967
    %v969 = vsel %vm206, %v205, 0.0
    %v970 = vadd.f32 %v968, %v969
    %v971 = vrot.slane %v970, 4
    %v972 = vadd.f32 %v970, %v971
    %v973 = vrot.slane %v972, 2
    %v974 = vadd.f32 %v972, %v973
    %v975 = vrot.slane %v974, 1
    %v976 = vadd.f32 %v974, %v975
    %v977 = vmul.f32 %v976, 3.0
    %v978 = vsub.f32 %v963, %v977
    %vm979 = vcmask 0
    %980 = vst.msk [vmem:[#allocation4] sm:$0x1] %vm979, %v978
    // Predicated region
    $region70: #{gnn_bench_forward.2} parent=1 // pred_check
      _
    $region71: #{gnn_bench_forward.2} parent=1 // pred_check_branch
      %982 = sbr.rel (0) target = $region73
    $region72: #{gnn_bench_forward.2} parent=1 // pred_region
      _
    $region73: #{gnn_bench_forward.2} parent=1 // pred_fallthru
      _
    // Predicated region
    $region74: #{gnn_bench_forward.2} parent=1 // pred_check
      _
    $region75: #{gnn_bench_forward.2} parent=1 // pred_check_branch
      %984 = sbr.rel (0) target = $region77
    $region76: #{gnn_bench_forward.2} parent=1 // pred_region
      %986 = vsyncadd [#allocation5], 0
      %s988 = sshll.u32 [#allocation4], 4
      %s989 = int_to_ptr.vmem [resolvable:$true] %s988
      %s990 = sshll.u32 %s18, 4
      %s991 = int_to_ptr.hbm [resolvable:$true] %s990
      %993 = dma.vmem_to_hbm [thread:$0]  %s989, 16, %s991, [#allocation5]
    $region77: #{gnn_bench_forward.2} parent=1 // pred_fallthru
      _
    // Predicated region
    $region78: #{gnn_bench_forward.2} parent=1 // pred_check
      _
    $region79: #{gnn_bench_forward.2} parent=1 // pred_check_branch
      %995 = sbr.rel (0) target = $region81
    $region80: #{gnn_bench_forward.2} parent=1 // pred_region
      _
    $region81: #{gnn_bench_forward.2} parent=1 // pred_fallthru
      _
    // Predicated region
    $region82: #{gnn_bench_forward.2} parent=1 // pred_check
      _
    $region83: #{gnn_bench_forward.2} parent=1 // pred_check_branch
      %997 = sbr.rel (0) target = $region85
    $region84: #{gnn_bench_forward.2} parent=1 // pred_region
      %999 = dma.done [#allocation5], 16
    $region85: #{gnn_bench_forward.2} parent=1 // pred_fallthru
      _
    %1000 = vsyncpa [#allocation5], 1

// kernel: gnn_bench_forward.3
$region0: #{gnn_bench_forward.3}
  #allocation0 [shape = 'u32[]', space=smem, size = 0x4, offset = 0x4, fixed_abs, tag = 'smem constant byte address 0x4 - core index']
  #allocation1 [shape = 'u32[72,128]{1,0:T(1,128)}', space=vmem, size = 0x9000, scoped, tag = 'internal scratch']
  #allocation2 [shape = 'f32[1,1]{1,0:T(1,128)S(1)}', space=vmem, size = 0x200, scoped, tag = 'scoped memory for gnn_bench_forward.3']
  %s0 = inlined_call_operand.vmem [shape: f32[32,8], index: 0, kind: input, shape index: {}]
  %s1 = inlined_call_operand.vmem [shape: f32[8,32], index: 1, kind: input, shape index: {}]
  %s2 = inlined_call_operand.vmem [shape: f32[1,32], index: 2, kind: input, shape index: {}]
  %s3 = inlined_call_operand.vmem [shape: bf16[32,32], index: 3, kind: input, shape index: {}]
  %s4 = inlined_call_operand.vmem [shape: f32[2,32,1], index: 4, kind: input, shape index: {}]
  %s5 = inlined_call_operand.vmem [shape: f32[2,32,32], index: 5, kind: input, shape index: {}]
  %s6 = inlined_call_operand.vmem [shape: f32[2,1,32], index: 6, kind: input, shape index: {}]
  %s7 = inlined_call_operand.vmem [shape: f32[2,32,32], index: 7, kind: input, shape index: {}]
  %s8 = inlined_call_operand.vmem [shape: f32[2,1,32], index: 8, kind: input, shape index: {}]
  %s9 = inlined_call_operand.vmem [shape: f32[2,1,32], index: 9, kind: input, shape index: {}]
  %s10 = inlined_call_operand.vmem [shape: f32[2,1,32], index: 10, kind: input, shape index: {}]
  %s11 = inlined_call_operand.vmem [shape: f32[4,32], index: 11, kind: input, shape index: {}]
  %s12 = inlined_call_operand.vmem [shape: f32[32,64], index: 12, kind: input, shape index: {}]
  %s13 = inlined_call_operand.vmem [shape: f32[1,64], index: 13, kind: input, shape index: {}]
  %s14 = inlined_call_operand.vmem [shape: f32[64,1], index: 14, kind: input, shape index: {}]
  %s15 = inlined_call_operand.<no memory space> [shape: f32[1,1], index: 15, kind: input, shape index: {}]
  %s16 = inlined_call_operand.vmem [shape: f32[4,1], index: 16, kind: output, shape index: {}]
  %s17 = sld [smem:[#allocation0]]
  $region74: #{gnn_bench_forward.3} parent=0
    _
  %s19 = ssub.s32 1, %s17
  %s20 = scalar_select 0, %s19, %s17
  %v21 = vstv %s15
  %22 = vst [vmem:[#allocation2] sm:$0x1] %v21
  // Predicated region
  $region2: #{gnn_bench_forward.3} parent=0 // pred_check
    _
  $region3: #{gnn_bench_forward.3} parent=0 // pred_check_branch
    %24 = sbr.rel (0) target = $region5
  $region4: #{gnn_bench_forward.3} parent=0 // pred_region
    _
  $region5: #{gnn_bench_forward.3} parent=0 // pred_fallthru
    _
  // Predicated region
  $region6: #{gnn_bench_forward.3} parent=0 // pred_check
    _
  $region7: #{gnn_bench_forward.3} parent=0 // pred_check_branch
    %26 = sbr.rel (0) target = $region9
  $region8: #{gnn_bench_forward.3} parent=0 // pred_region
    _
  $region9: #{gnn_bench_forward.3} parent=0 // pred_fallthru
    _
  // Predicated region
  $region10: #{gnn_bench_forward.3} parent=0 // pred_check
    _
  $region11: #{gnn_bench_forward.3} parent=0 // pred_check_branch
    %28 = sbr.rel (0) target = $region13
  $region12: #{gnn_bench_forward.3} parent=0 // pred_region
    _
  $region13: #{gnn_bench_forward.3} parent=0 // pred_fallthru
    _
  // Predicated region
  $region14: #{gnn_bench_forward.3} parent=0 // pred_check
    _
  $region15: #{gnn_bench_forward.3} parent=0 // pred_check_branch
    %30 = sbr.rel (0) target = $region17
  $region16: #{gnn_bench_forward.3} parent=0 // pred_region
    _
  $region17: #{gnn_bench_forward.3} parent=0 // pred_fallthru
    _
  // Predicated region
  $region18: #{gnn_bench_forward.3} parent=0 // pred_check
    _
  $region19: #{gnn_bench_forward.3} parent=0 // pred_check_branch
    %32 = sbr.rel (0) target = $region21
  $region20: #{gnn_bench_forward.3} parent=0 // pred_region
    _
  $region21: #{gnn_bench_forward.3} parent=0 // pred_fallthru
    _
  // Predicated region
  $region22: #{gnn_bench_forward.3} parent=0 // pred_check
    _
  $region23: #{gnn_bench_forward.3} parent=0 // pred_check_branch
    %34 = sbr.rel (0) target = $region25
  $region24: #{gnn_bench_forward.3} parent=0 // pred_region
    _
  $region25: #{gnn_bench_forward.3} parent=0 // pred_fallthru
    _
  // Predicated region
  $region26: #{gnn_bench_forward.3} parent=0 // pred_check
    _
  $region27: #{gnn_bench_forward.3} parent=0 // pred_check_branch
    %36 = sbr.rel (0) target = $region29
  $region28: #{gnn_bench_forward.3} parent=0 // pred_region
    _
  $region29: #{gnn_bench_forward.3} parent=0 // pred_fallthru
    _
  // Predicated region
  $region30: #{gnn_bench_forward.3} parent=0 // pred_check
    _
  $region31: #{gnn_bench_forward.3} parent=0 // pred_check_branch
    %38 = sbr.rel (0) target = $region33
  $region32: #{gnn_bench_forward.3} parent=0 // pred_region
    _
  $region33: #{gnn_bench_forward.3} parent=0 // pred_fallthru
    _
  // Predicated region
  $region34: #{gnn_bench_forward.3} parent=0 // pred_check
    _
  $region35: #{gnn_bench_forward.3} parent=0 // pred_check_branch
    %40 = sbr.rel (0) target = $region37
  $region36: #{gnn_bench_forward.3} parent=0 // pred_region
    _
  $region37: #{gnn_bench_forward.3} parent=0 // pred_fallthru
    _
  // Predicated region
  $region38: #{gnn_bench_forward.3} parent=0 // pred_check
    _
  $region39: #{gnn_bench_forward.3} parent=0 // pred_check_branch
    %42 = sbr.rel (0) target = $region41
  $region40: #{gnn_bench_forward.3} parent=0 // pred_region
    _
  $region41: #{gnn_bench_forward.3} parent=0 // pred_fallthru
    _
  // Predicated region
  $region42: #{gnn_bench_forward.3} parent=0 // pred_check
    _
  $region43: #{gnn_bench_forward.3} parent=0 // pred_check_branch
    %44 = sbr.rel (0) target = $region45
  $region44: #{gnn_bench_forward.3} parent=0 // pred_region
    _
  $region45: #{gnn_bench_forward.3} parent=0 // pred_fallthru
    _
  // Predicated region
  $region46: #{gnn_bench_forward.3} parent=0 // pred_check
    _
  $region47: #{gnn_bench_forward.3} parent=0 // pred_check_branch
    %46 = sbr.rel (0) target = $region49
  $region48: #{gnn_bench_forward.3} parent=0 // pred_region
    _
  $region49: #{gnn_bench_forward.3} parent=0 // pred_fallthru
    _
  // Predicated region
  $region50: #{gnn_bench_forward.3} parent=0 // pred_check
    _
  $region51: #{gnn_bench_forward.3} parent=0 // pred_check_branch
    %48 = sbr.rel (0) target = $region53
  $region52: #{gnn_bench_forward.3} parent=0 // pred_region
    _
  $region53: #{gnn_bench_forward.3} parent=0 // pred_fallthru
    _
  // Predicated region
  $region54: #{gnn_bench_forward.3} parent=0 // pred_check
    _
  $region55: #{gnn_bench_forward.3} parent=0 // pred_check_branch
    %50 = sbr.rel (0) target = $region57
  $region56: #{gnn_bench_forward.3} parent=0 // pred_region
    _
  $region57: #{gnn_bench_forward.3} parent=0 // pred_fallthru
    _
  // Predicated region
  $region58: #{gnn_bench_forward.3} parent=0 // pred_check
    _
  $region59: #{gnn_bench_forward.3} parent=0 // pred_check_branch
    %52 = sbr.rel (0) target = $region61
  $region60: #{gnn_bench_forward.3} parent=0 // pred_region
    _
  $region61: #{gnn_bench_forward.3} parent=0 // pred_fallthru
    _
  // Predicated region
  $region62: #{gnn_bench_forward.3} parent=0 // pred_check
    _
  $region63: #{gnn_bench_forward.3} parent=0 // pred_check_branch
    %54 = sbr.rel (0) target = $region65
  $region64: #{gnn_bench_forward.3} parent=0 // pred_region
    _
  $region65: #{gnn_bench_forward.3} parent=0 // pred_fallthru
    _
  %v56 = vld [vmem:[%s3] sm:$0xf]
  %v57 = vld [vmem:[%s3 + $0x4] sm:$0xf]
  %v58 = vld [vmem:[%s3 + $0x8] sm:$0xf]
  %v59 = vld [vmem:[%s3 + $0xc] sm:$0xf]
  %v60 = vld [vmem:[%s0] sm:$0xff]
  %v61 = vld [vmem:[%s0 + $0x8] sm:$0xff]
  %v62 = vld [vmem:[%s0 + $0x10] sm:$0xff]
  %v63 = vld [vmem:[%s0 + $0x18] sm:$0xff]
  %v64 = vld [vmem:[%s1] sm:$0xff]
  %v65 = vpack.c.bf16 %v61, %v60
  %v66 = vpack.c.bf16 %v63, %v62
  %v67 = vpack.c.bf16 %v64, %v64
  %v68 = vld [vmem:[%s2] sm:$0x1]
  %v70 = vperm.slane %v68, 0
  %vm72 = vcmask 64512
  %v74 = vsel %vm72, %v65, 0
  %v77 = vsel %vm72, %v66, 0
  %vm79 = vcmask 1043456
  %v81 = vsel %vm79, %v67, 0
  %83 = vmatpush.bf16.msra.mxu0 0
  %84 = vmatpush.bf16.msra.mxu0 0
  %85 = vmatpush.bf16.msra.mxu0 0
  %86 = vmatpush.bf16.msra.mxu0 0
  %87 = vmatpush.bf16.msra.mxu0 0
  %88 = vmatpush.bf16.msra.mxu0 0
  %89 = vmatpush.bf16.msra.mxu0 0
  %90 = vmatpush.bf16.msra.mxu0 %v81
  %91 = vmatmul.bf16.gmra.mxu0 %v74
  %v92 = vpop.f32.mrf.mxu0
  %v93 = vadd.f32 %v70, %v92
  %v94 = vpop.f32.mrf.mxu0
  %v95 = vadd.f32 %v70, %v94
  %96 = vmatmul.bf16.gmra.mxu0 %v77
  %v97 = vpop.f32.mrf.mxu0
  %v98 = vadd.f32 %v70, %v97
  %v99 = vpop.f32.mrf.mxu0
  %v100 = vadd.f32 %v70, %v99
  %101 = vdwg.mxu0
  %v102 = vld [vmem:[%s4] sm:$0xff]
  %v103 = vld [vmem:[%s4 + $0x8] sm:$0xff]
  %v104 = vld [vmem:[%s4 + $0x10] sm:$0xff]
  %v105 = vld [vmem:[%s4 + $0x18] sm:$0xff]
  %107 = vset.pattern.permute.xlu0 0
  %108 = vperm.xlu0 %107, %v102
  %v109 = vpop.permute.xlu0 %108
  %112 = vset.pattern.permute.xlu0 0
  %113 = vperm.xlu0 %112, %v103
  %v114 = vpop.permute.xlu0 %113
  %117 = vset.pattern.permute.xlu0 0
  %118 = vperm.xlu0 %117, %v104
  %v119 = vpop.permute.xlu0 %118
  %122 = vset.pattern.permute.xlu0 0
  %123 = vperm.xlu0 %122, %v105
  %v124 = vpop.permute.xlu0 %123
  %v126 = vmul.f32 %v109, %v93
  %v127 = vmul.f32 %v114, %v95
  %v128 = vmul.f32 %v119, %v98
  %v129 = vmul.f32 %v124, %v100
  %v130 = vpack.c.bf16 %v127, %v126
  %v131 = vpack.c.bf16 %v129, %v128
  %v136 = vunpack.c.l.b16 %v56
  %v137 = vunpack.c.l.b16 %v57
  %v138 = vunpack.c.l.b16 %v58
  %v139 = vunpack.c.l.b16 %v59
  %v140 = vpack.c.b16 %v137, %v136
  %v141 = vpack.c.b16 %v139, %v138
  %vm142 = vcmask 261120
  %v144 = vsel %vm142, %v140, 0
  %v147 = vsel %vm142, %v141, 0
  %149 = vmatpush.bf16.msra.mxu0 0
  %150 = vmatpush.bf16.msra.mxu0 0
  %151 = vmatpush.bf16.msra.mxu0 0
  %152 = vmatpush.bf16.msra.mxu0 0
  %153 = vmatpush.bf16.msra.mxu0 0
  %154 = vmatpush.bf16.msra.mxu0 0
  %155 = vmatpush.bf16.msra.mxu0 %v131
  %156 = vmatpush.bf16.msra.mxu0 %v130
  %157 = vmatmul.bf16.gmra.mxu0 %v144
  %v158 = vpop.f32.mrf.mxu0
  %v159 = vadd.f32 0.0, %v158
  %v160 = vpop.f32.mrf.mxu0
  %v161 = vadd.f32 0.0, %v160
  %162 = vmatmul.bf16.gmra.mxu0 %v147
  %v163 = vpop.f32.mrf.mxu0
  %v164 = vadd.f32 0.0, %v163
  %v165 = vpop.f32.mrf.mxu0
  %v166 = vadd.f32 0.0, %v165
  %167 = vdwg.mxu0
  %v168 = vmul.f32 %v109, %v159
  %v169 = vmul.f32 %v114, %v161
  %v170 = vmul.f32 %v119, %v164
  %v171 = vmul.f32 %v124, %v166
  %v172 = vadd.f32 %v93, %v168
  %v173 = vadd.f32 %v95, %v169
  %v174 = vadd.f32 %v98, %v170
  %v175 = vadd.f32 %v100, %v171
  %v176 = vld [vmem:[%s5] sm:$0xff]
  %v177 = vld [vmem:[%s5 + $0x8] sm:$0xff]
  %v178 = vld [vmem:[%s5 + $0x10] sm:$0xff]
  %v179 = vld [vmem:[%s5 + $0x18] sm:$0xff]
  %v180 = vpack.c.bf16 %v173, %v172
  %v181 = vpack.c.bf16 %v175, %v174
  %v182 = vpack.c.bf16 %v177, %v176
  %v183 = vpack.c.bf16 %v179, %v178
  %v184 = vld [vmem:[%s6] sm:$0x1]
  %v186 = vperm.slane %v184, 0
  %v189 = vsel %vm142, %v180, 0
  %v192 = vsel %vm142, %v181, 0
  %194 = vmatpush.bf16.msra.mxu0 0
  %195 = vmatpush.bf16.msra.mxu0 0
  %196 = vmatpush.bf16.msra.mxu0 0
  %197 = vmatpush.bf16.msra.mxu0 0
  %198 = vmatpush.bf16.msra.mxu0 0
  %199 = vmatpush.bf16.msra.mxu0 0
  %200 = vmatpush.bf16.msra.mxu0 %v183
  %201 = vmatpush.bf16.msra.mxu0 %v182
  %202 = vmatmul.bf16.gmra.mxu0 %v189
  %v203 = vpop.f32.mrf.mxu0
  %v204 = vadd.f32 %v186, %v203
  %v205 = vpop.f32.mrf.mxu0
  %v206 = vadd.f32 %v186, %v205
  %207 = vmatmul.bf16.gmra.mxu0 %v192
  %v208 = vpop.f32.mrf.mxu0
  %v209 = vadd.f32 %v186, %v208
  %v210 = vpop.f32.mrf.mxu0
  %v211 = vadd.f32 %v186, %v210
  %212 = vdwg.mxu0
  %v213 = vmax.f32 %v204, 0.0
  %v214 = vmax.f32 %v206, 0.0
  %v215 = vmax.f32 %v209, 0.0
  %v216 = vmax.f32 %v211, 0.0
  %v217 = vld [vmem:[%s7] sm:$0xff]
  %v218 = vld [vmem:[%s7 + $0x8] sm:$0xff]
  %v219 = vld [vmem:[%s7 + $0x10] sm:$0xff]
  %v220 = vld [vmem:[%s7 + $0x18] sm:$0xff]
  %v221 = vpack.c.bf16 %v214, %v213
  %v222 = vpack.c.bf16 %v216, %v215
  %v223 = vpack.c.bf16 %v218, %v217
  %v224 = vpack.c.bf16 %v220, %v219
  %v225 = vld [vmem:[%s8] sm:$0x1]
  %v227 = vperm.slane %v225, 0
  %v230 = vsel %vm142, %v221, 0
  %v233 = vsel %vm142, %v222, 0
  %235 = vmatpush.bf16.msra.mxu0 0
  %236 = vmatpush.bf16.msra.mxu0 0
  %237 = vmatpush.bf16.msra.mxu0 0
  %238 = vmatpush.bf16.msra.mxu0 0
  %239 = vmatpush.bf16.msra.mxu0 0
  %240 = vmatpush.bf16.msra.mxu0 0
  %241 = vmatpush.bf16.msra.mxu0 %v224
  %242 = vmatpush.bf16.msra.mxu0 %v223
  %243 = vmatmul.bf16.gmra.mxu0 %v230
  %v244 = vpop.f32.mrf.mxu0
  %v245 = vadd.f32 %v227, %v244
  %v246 = vpop.f32.mrf.mxu0
  %v247 = vadd.f32 %v227, %v246
  %248 = vmatmul.bf16.gmra.mxu0 %v233
  %v249 = vpop.f32.mrf.mxu0
  %v250 = vadd.f32 %v227, %v249
  %v251 = vpop.f32.mrf.mxu0
  %v252 = vadd.f32 %v227, %v251
  %253 = vdwg.mxu0
  %v254 = vsel %vm142, %v245, 0.0
  %v255 = vsel %vm142, %v247, 0.0
  %v256 = vadd.f32 %v254, %v255
  %v257 = vsel %vm142, %v250, 0.0
  %v258 = vadd.f32 %v256, %v257
  %v259 = vsel %vm142, %v252, 0.0
  %v260 = vadd.f32 %v258, %v259
  %v261 = vrot.slane %v260, 4
  %v262 = vadd.f32 %v260, %v261
  %v263 = vrot.slane %v262, 2
  %v264 = vadd.f32 %v262, %v263
  %v265 = vrot.slane %v264, 1
  %v266 = vadd.f32 %v264, %v265
  %v267 = vrcp.pop 32.0
  %v268 = vmul.f32 32.0, %v267
  %v269 = vsub.f32 1.0, %v268
  %v270 = vmul.f32 %v267, %v269
  %v271 = vadd.f32 %v267, %v270
  %vm272 = vweird.f32 %v267
  %v273 = vsel %vm272, %v267, %v271
  %v274 = vmul.f32 %v266, %v273
  %v275 = vsub.f32 %v245, %v274
  %v276 = vsub.f32 %v247, %v274
  %v277 = vsub.f32 %v250, %v274
  %v278 = vsub.f32 %v252, %v274
  %v279 = vmul.f32 %v275, %v275
  %v280 = vmul.f32 %v276, %v276
  %v281 = vmul.f32 %v277, %v277
  %v282 = vmul.f32 %v278, %v278
  %v283 = vsel %vm142, %v279, 0.0
  %v284 = vsel %vm142, %v280, 0.0
  %v285 = vadd.f32 %v283, %v284
  %v286 = vsel %vm142, %v281, 0.0
  %v287 = vadd.f32 %v285, %v286
  %v288 = vsel %vm142, %v282, 0.0
  %v289 = vadd.f32 %v287, %v288
  %v290 = vrot.slane %v289, 4
  %v291 = vadd.f32 %v289, %v290
  %v292 = vrot.slane %v291, 2
  %v293 = vadd.f32 %v291, %v292
  %v294 = vrot.slane %v293, 1
  %v295 = vadd.f32 %v293, %v294
  %v296 = vmul.f32 %v295, %v273
  %v297 = vadd.f32 %v296, 1e-05
  %v298 = vrsqrt.pop %v297
  %v299 = vmul.f32 %v298, %v297
  %v300 = vmul.f32 %v299, %v298
  %v301 = vmul.f32 0.5, %v300
  %v302 = vsub.f32 1.5, %v301
  %v303 = vmul.f32 %v298, %v302
  %vm304 = vweird.f32 %v297
  %vm305 = vweird.f32 %v298
  %vm306 = vmor %vm304, %vm305
  %v307 = vsel %vm306, %v298, %v303
  %v308 = vmul.f32 %v275, %v307
  %v309 = vmul.f32 %v276, %v307
  %v310 = vmul.f32 %v277, %v307
  %v311 = vmul.f32 %v278, %v307
  %v312 = vld [vmem:[%s9] sm:$0x1]
  %v314 = vperm.slane %v312, 0
  %v316 = vmul.f32 %v308, %v314
  %v317 = vmul.f32 %v309, %v314
  %v318 = vmul.f32 %v310, %v314
  %v319 = vmul.f32 %v311, %v314
  %v320 = vld [vmem:[%s10] sm:$0x1]
  %v322 = vperm.slane %v320, 0
  %v324 = vadd.f32 %v316, %v322
  %v325 = vadd.f32 %v317, %v322
  %v326 = vadd.f32 %v318, %v322
  %v327 = vadd.f32 %v319, %v322
  %v328 = vmax.f32 %v324, 0.0
  %v329 = vmax.f32 %v325, 0.0
  %v330 = vmax.f32 %v326, 0.0
  %v331 = vmax.f32 %v327, 0.0
  %v332 = vadd.f32 %v328, %v93
  %v333 = vadd.f32 %v329, %v95
  %v334 = vadd.f32 %v330, %v98
  %v335 = vadd.f32 %v331, %v100
  %s336 = scalar_lea.vmem %s4, 32
  %v337 = vld [vmem:[%s336] sm:$0xff]
  %v338 = vld [vmem:[%s336 + $0x8] sm:$0xff]
  %v339 = vld [vmem:[%s336 + $0x10] sm:$0xff]
  %v340 = vld [vmem:[%s336 + $0x18] sm:$0xff]
  %342 = vset.pattern.permute.xlu0 0
  %343 = vperm.xlu0 %342, %v337
  %v344 = vpop.permute.xlu0 %343
  %347 = vset.pattern.permute.xlu0 0
  %348 = vperm.xlu0 %347, %v338
  %v349 = vpop.permute.xlu0 %348
  %352 = vset.pattern.permute.xlu0 0
  %353 = vperm.xlu0 %352, %v339
  %v354 = vpop.permute.xlu0 %353
  %357 = vset.pattern.permute.xlu0 0
  %358 = vperm.xlu0 %357, %v340
  %v359 = vpop.permute.xlu0 %358
  %v361 = vmul.f32 %v344, %v332
  %v362 = vmul.f32 %v349, %v333
  %v363 = vmul.f32 %v354, %v334
  %v364 = vmul.f32 %v359, %v335
  %v365 = vpack.c.bf16 %v362, %v361
  %v366 = vpack.c.bf16 %v364, %v363
  %367 = vmatpush.bf16.msra.mxu0 0
  %368 = vmatpush.bf16.msra.mxu0 0
  %369 = vmatpush.bf16.msra.mxu0 0
  %370 = vmatpush.bf16.msra.mxu0 0
  %371 = vmatpush.bf16.msra.mxu0 0
  %372 = vmatpush.bf16.msra.mxu0 0
  %373 = vmatpush.bf16.msra.mxu0 %v366
  %374 = vmatpush.bf16.msra.mxu0 %v365
  %375 = vmatmul.bf16.gmra.mxu0 %v144
  %v376 = vpop.f32.mrf.mxu0
  %v377 = vadd.f32 0.0, %v376
  %v378 = vpop.f32.mrf.mxu0
  %v379 = vadd.f32 0.0, %v378
  %380 = vmatmul.bf16.gmra.mxu0 %v147
  %v381 = vpop.f32.mrf.mxu0
  %v382 = vadd.f32 0.0, %v381
  %v383 = vpop.f32.mrf.mxu0
  %v384 = vadd.f32 0.0, %v383
  %385 = vdwg.mxu0
  %v386 = vmul.f32 %v344, %v377
  %v387 = vmul.f32 %v349, %v379
  %v388 = vmul.f32 %v354, %v382
  %v389 = vmul.f32 %v359, %v384
  %v390 = vadd.f32 %v332, %v386
  %v391 = vadd.f32 %v333, %v387
  %v392 = vadd.f32 %v334, %v388
  %v393 = vadd.f32 %v335, %v389
  %s394 = scalar_lea.vmem %s5, 32
  %v395 = vld [vmem:[%s394] sm:$0xff]
  %v396 = vld [vmem:[%s394 + $0x8] sm:$0xff]
  %v397 = vld [vmem:[%s394 + $0x10] sm:$0xff]
  %v398 = vld [vmem:[%s394 + $0x18] sm:$0xff]
  %v399 = vpack.c.bf16 %v391, %v390
  %v400 = vpack.c.bf16 %v393, %v392
  %v401 = vpack.c.bf16 %v396, %v395
  %v402 = vpack.c.bf16 %v398, %v397
  %s403 = scalar_lea.vmem %s6, 1
  %v404 = vld [vmem:[%s403] sm:$0x1]
  %v406 = vperm.slane %v404, 0
  %v409 = vsel %vm142, %v399, 0
  %v412 = vsel %vm142, %v400, 0
  %414 = vmatpush.bf16.msra.mxu0 0
  %415 = vmatpush.bf16.msra.mxu0 0
  %416 = vmatpush.bf16.msra.mxu0 0
  %417 = vmatpush.bf16.msra.mxu0 0
  %418 = vmatpush.bf16.msra.mxu0 0
  %419 = vmatpush.bf16.msra.mxu0 0
  %420 = vmatpush.bf16.msra.mxu0 %v402
  %421 = vmatpush.bf16.msra.mxu0 %v401
  %422 = vmatmul.bf16.gmra.mxu0 %v409
  %v423 = vpop.f32.mrf.mxu0
  %v424 = vadd.f32 %v406, %v423
  %v425 = vpop.f32.mrf.mxu0
  %v426 = vadd.f32 %v406, %v425
  %427 = vmatmul.bf16.gmra.mxu0 %v412
  %v428 = vpop.f32.mrf.mxu0
  %v429 = vadd.f32 %v406, %v428
  %v430 = vpop.f32.mrf.mxu0
  %v431 = vadd.f32 %v406, %v430
  %432 = vdwg.mxu0
  %v433 = vmax.f32 %v424, 0.0
  %v434 = vmax.f32 %v426, 0.0
  %v435 = vmax.f32 %v429, 0.0
  %v436 = vmax.f32 %v431, 0.0
  %s437 = scalar_lea.vmem %s7, 32
  %v438 = vld [vmem:[%s437] sm:$0xff]
  %v439 = vld [vmem:[%s437 + $0x8] sm:$0xff]
  %v440 = vld [vmem:[%s437 + $0x10] sm:$0xff]
  %v441 = vld [vmem:[%s437 + $0x18] sm:$0xff]
  %v442 = vpack.c.bf16 %v434, %v433
  %v443 = vpack.c.bf16 %v436, %v435
  %v444 = vpack.c.bf16 %v439, %v438
  %v445 = vpack.c.bf16 %v441, %v440
  %s446 = scalar_lea.vmem %s8, 1
  %v447 = vld [vmem:[%s446] sm:$0x1]
  %v449 = vperm.slane %v447, 0
  %v452 = vsel %vm142, %v442, 0
  %v455 = vsel %vm142, %v443, 0
  %457 = vmatpush.bf16.msra.mxu0 0
  %458 = vmatpush.bf16.msra.mxu0 0
  %459 = vmatpush.bf16.msra.mxu0 0
  %460 = vmatpush.bf16.msra.mxu0 0
  %461 = vmatpush.bf16.msra.mxu0 0
  %462 = vmatpush.bf16.msra.mxu0 0
  %463 = vmatpush.bf16.msra.mxu0 %v445
  %464 = vmatpush.bf16.msra.mxu0 %v444
  %465 = vmatmul.bf16.gmra.mxu0 %v452
  %v466 = vpop.f32.mrf.mxu0
  %v467 = vadd.f32 %v449, %v466
  %v468 = vpop.f32.mrf.mxu0
  %v469 = vadd.f32 %v449, %v468
  %470 = vmatmul.bf16.gmra.mxu0 %v455
  %v471 = vpop.f32.mrf.mxu0
  %v472 = vadd.f32 %v449, %v471
  %v473 = vpop.f32.mrf.mxu0
  %v474 = vadd.f32 %v449, %v473
  %475 = vdwg.mxu0
  %v476 = vsel %vm142, %v467, 0.0
  %v477 = vsel %vm142, %v469, 0.0
  %v478 = vadd.f32 %v476, %v477
  %v479 = vsel %vm142, %v472, 0.0
  %v480 = vadd.f32 %v478, %v479
  %v481 = vsel %vm142, %v474, 0.0
  %v482 = vadd.f32 %v480, %v481
  %v483 = vrot.slane %v482, 4
  %v484 = vadd.f32 %v482, %v483
  %v485 = vrot.slane %v484, 2
  %v486 = vadd.f32 %v484, %v485
  %v487 = vrot.slane %v486, 1
  %v488 = vadd.f32 %v486, %v487
  %v489 = vmul.f32 %v488, %v273
  %v490 = vsub.f32 %v467, %v489
  %v491 = vsub.f32 %v469, %v489
  %v492 = vsub.f32 %v472, %v489
  %v493 = vsub.f32 %v474, %v489
  %v494 = vmul.f32 %v490, %v490
  %v495 = vmul.f32 %v491, %v491
  %v496 = vmul.f32 %v492, %v492
  %v497 = vmul.f32 %v493, %v493
  %v498 = vsel %vm142, %v494, 0.0
  %v499 = vsel %vm142, %v495, 0.0
  %v500 = vadd.f32 %v498, %v499
  %v501 = vsel %vm142, %v496, 0.0
  %v502 = vadd.f32 %v500, %v501
  %v503 = vsel %vm142, %v497, 0.0
  %v504 = vadd.f32 %v502, %v503
  %v505 = vrot.slane %v504, 4
  %v506 = vadd.f32 %v504, %v505
  %v507 = vrot.slane %v506, 2
  %v508 = vadd.f32 %v506, %v507
  %v509 = vrot.slane %v508, 1
  %v510 = vadd.f32 %v508, %v509
  %v511 = vmul.f32 %v510, %v273
  %v512 = vadd.f32 %v511, 1e-05
  %v513 = vrsqrt.pop %v512
  %v514 = vmul.f32 %v513, %v512
  %v515 = vmul.f32 %v514, %v513
  %v516 = vmul.f32 0.5, %v515
  %v517 = vsub.f32 1.5, %v516
  %v518 = vmul.f32 %v513, %v517
  %vm519 = vweird.f32 %v512
  %vm520 = vweird.f32 %v513
  %vm521 = vmor %vm519, %vm520
  %v522 = vsel %vm521, %v513, %v518
  %v523 = vmul.f32 %v490, %v522
  %v524 = vmul.f32 %v491, %v522
  %v525 = vmul.f32 %v492, %v522
  %v526 = vmul.f32 %v493, %v522
  %s527 = scalar_lea.vmem %s9, 1
  %v528 = vld [vmem:[%s527] sm:$0x1]
  %v530 = vperm.slane %v528, 0
  %v532 = vmul.f32 %v523, %v530
  %v533 = vmul.f32 %v524, %v530
  %v534 = vmul.f32 %v525, %v530
  %v535 = vmul.f32 %v526, %v530
  %s536 = scalar_lea.vmem %s10, 1
  %v537 = vld [vmem:[%s536] sm:$0x1]
  %v539 = vperm.slane %v537, 0
  %v541 = vadd.f32 %v532, %v539
  %v542 = vadd.f32 %v533, %v539
  %v543 = vadd.f32 %v534, %v539
  %v544 = vadd.f32 %v535, %v539
  %v545 = vmax.f32 %v541, 0.0
  %v546 = vmax.f32 %v542, 0.0
  %v547 = vmax.f32 %v543, 0.0
  %v548 = vmax.f32 %v544, 0.0
  %v549 = vadd.f32 %v545, %v332
  %v550 = vadd.f32 %v546, %v333
  %v551 = vadd.f32 %v547, %v334
  %v552 = vadd.f32 %v548, %v335
  %v553 = vld [vmem:[%s11] sm:$0xf]
  %v554 = vpack.c.bf16 %v553, %v553
  %v555 = vpack.c.bf16 %v550, %v549
  %v556 = vpack.c.bf16 %v552, %v551
  %v558 = vsel %vm142, %v554, 0
  %560 = vmatpush.bf16.msra.mxu0 0
  %561 = vmatpush.bf16.msra.mxu0 0
  %562 = vmatpush.bf16.msra.mxu0 0
  %563 = vmatpush.bf16.msra.mxu0 0
  %564 = vmatpush.bf16.msra.mxu0 0
  %565 = vmatpush.bf16.msra.mxu0 0
  %566 = vmatpush.bf16.msra.mxu0 %v556
  %567 = vmatpush.bf16.msra.mxu0 %v555
  %568 = vmatmul.bf16.gmra.mxu0 %v558
  %v569 = vpop.f32.mrf.mxu0
  %v570 = vadd.f32 0.0, %v569
  %v571 = vpop.f32.mrf.mxu0
  %572 = vdwg.mxu0
  %v573 = vld [vmem:[%s12] sm:$0xff]
  %v574 = vld [vmem:[%s12 + $0x8] sm:$0xff]
  %v575 = vld [vmem:[%s12 + $0x10] sm:$0xff]
  %v576 = vld [vmem:[%s12 + $0x18] sm:$0xff]
  %v577 = vpack.c.bf16 %v570, %v570
  %v578 = vpack.c.bf16 %v574, %v573
  %v579 = vpack.c.bf16 %v576, %v575
  %v580 = vld [vmem:[%s13] sm:$0x1]
  %v582 = vperm.slane %v580, 0
  %v585 = vsel %vm142, %v577, 0
  %587 = vmatpush.bf16.msra.mxu0 0
  %588 = vmatpush.bf16.msra.mxu0 0
  %589 = vmatpush.bf16.msra.mxu0 0
  %590 = vmatpush.bf16.msra.mxu0 0
  %591 = vmatpush.bf16.msra.mxu0 0
  %592 = vmatpush.bf16.msra.mxu0 0
  %593 = vmatpush.bf16.msra.mxu0 %v579
  %594 = vmatpush.bf16.msra.mxu0 %v578
  %595 = vmatmul.bf16.gmra.mxu0 %v585
  %v596 = vpop.f32.mrf.mxu0
  %v597 = vadd.f32 %v582, %v596
  %v598 = vpop.f32.mrf.mxu0
  %599 = vdwg.mxu0
  %v600 = vmax.f32 %v597, 0.0
  %v601 = vld [vmem:[%s14] sm:$0xff]
  %v602 = vld [vmem:[%s14 + $0x8] sm:$0xff]
  %v603 = vld [vmem:[%s14 + $0x10] sm:$0xff]
  %v604 = vld [vmem:[%s14 + $0x18] sm:$0xff]
  %v605 = vld [vmem:[%s14 + $0x20] sm:$0xff]
  %v606 = vld [vmem:[%s14 + $0x28] sm:$0xff]
  %v607 = vld [vmem:[%s14 + $0x30] sm:$0xff]
  %v608 = vld [vmem:[%s14 + $0x38] sm:$0xff]
  %v609 = vpack.c.bf16 %v600, %v600
  %v610 = vpack.c.bf16 %v602, %v601
  %v611 = vpack.c.bf16 %v604, %v603
  %v612 = vpack.c.bf16 %v606, %v605
  %v613 = vpack.c.bf16 %v608, %v607
  %v614 = vld [vmem:[#allocation2] sm:$0x1]
  %v616 = vperm.slane %v614, 0
  %vm618 = vcmask 523264
  %v620 = vsel %vm618, %v609, 0
  %622 = vmatpush.bf16.msra.mxu0 0
  %623 = vmatpush.bf16.msra.mxu0 0
  %624 = vmatpush.bf16.msra.mxu0 0
  %625 = vmatpush.bf16.msra.mxu0 0
  %626 = vmatpush.bf16.msra.mxu0 %v613
  %627 = vmatpush.bf16.msra.mxu0 %v612
  %628 = vmatpush.bf16.msra.mxu0 %v611
  %629 = vmatpush.bf16.msra.mxu0 %v610
  %630 = vmatmul.bf16.gmra.mxu0 %v620
  %v631 = vpop.f32.mrf.mxu0
  %v632 = vadd.f32 %v616, %v631
  %v633 = vpop.f32.mrf.mxu0
  %634 = vdwg.mxu0
  %vm635 = vcmask 3072
  %636 = vst.msk [vmem:[%s16] sm:$0xf] %vm635, %v632
  // Predicated region
  $region66: #{gnn_bench_forward.3} parent=0 // pred_check
    _
  $region67: #{gnn_bench_forward.3} parent=0 // pred_check_branch
    %638 = sbr.rel (0) target = $region69
  $region68: #{gnn_bench_forward.3} parent=0 // pred_region
    _
  $region69: #{gnn_bench_forward.3} parent=0 // pred_fallthru
    _
  // Predicated region
  $region70: #{gnn_bench_forward.3} parent=0 // pred_check
    _
  $region71: #{gnn_bench_forward.3} parent=0 // pred_check_branch
    %640 = sbr.rel (0) target = $region73
  $region72: #{gnn_bench_forward.3} parent=0 // pred_region
    _
  $region73: #{gnn_bench_forward.3} parent=0 // pred_fallthru
    _

</llo_original>
